<compile_context>
chip_gen: v7x
topology: tpu7x:2x2x1
jax: 0.10.0
libtpu: 0.0.40
codegen_flags: <defaults>
</compile_context>

<pallas_src>
import numpy as np
import jax
import jax.numpy as jnp
from jax import lax
from jax.experimental import pallas as pl
from jax.experimental.pallas import tpu as pltpu


def _up2_matrix(n: int) -> np.ndarray:
    """(2n, n) resize matrix matching F.interpolate(scale_factor=2, mode='bilinear',
    align_corners=False) along one axis."""
    out = 2 * n
    dst = np.arange(out, dtype=np.float64)
    src = 0.5 * (dst + 0.5) - 0.5
    src = np.maximum(src, 0.0)                       # PyTorch clamps negative source coords
    i0 = np.minimum(np.floor(src).astype(np.int64), n - 1)
    i1 = np.minimum(i0 + 1, n - 1)
    l1 = src - i0
    m = np.zeros((out, n), dtype=np.float32)
    m[np.arange(out), i0] += (1.0 - l1).astype(np.float32)
    m[np.arange(out), i1] += l1.astype(np.float32)
    return m


def _band_conv_matrix(w, n):
    """w: (3, 3, Ci, Co) HWIO 3x3 kernel -> (3, n*Ci, n*Co) banded matrices W[dy] so that
    out_row[p] = sum_dy in_row[p+dy-1] @ W[dy] implements a SAME 3x3 conv on rows packed as
    (q*Ci + ci) in lanes. Width taps + channel contraction are folded into the band."""
    kh, kw, ci, co = w.shape
    wb = jnp.zeros((kh, n, ci, n, co), w.dtype)
    for dx in range(kw):
        q = np.arange(n)
        qi = q + dx - 1                              # input column feeding output column q
        valid = (qi >= 0) & (qi < n)
        qv, qiv = q[valid], qi[valid]
        # advanced indices separated by a slice -> indexed dim moves to front: (L, kh, ci, co)
        wb = wb.at[:, qiv, :, qv, :].set(w[:, dx, :, :][None])
    return wb.reshape(kh, n * ci, n * co)


def _decoder_kernel(x_ref, ah_ref, awp_ref, w1_ref, b1_ref, w2_ref, b2_ref, o_ref, pad1, pad2):
    # Block shapes: x_ref (1, H, W*Cin); ah_ref (P, H); awp_ref (W*Cin, Q*Cin);
    # w*_ref (3, Q*Cin_prev, Q*Cout); b*_ref (1, Q*Cout); o_ref (1, P, Q*Cout).
    P = ah_ref.shape[0]

    # ---- fused bilinear x2 upsample (two MXU matmuls, stays in VMEM/vregs) ----
    t = jnp.dot(ah_ref[...], x_ref[0], preferred_element_type=jnp.float32)   # (P, W*Cin)
    xu = jnp.dot(t, awp_ref[...], preferred_element_type=jnp.float32)        # (P, Q*Cin)

    # Re-zero only the 1-row halo (2 rows per scratch, lane-dense) every step; interior rows are
    # fully overwritten. Kept unconditional so the batch axis can be "parallel" on v7x.
    pad1[0:1, :] = jnp.zeros((1, pad1.shape[1]), jnp.float32)
    pad1[P + 1:P + 2, :] = jnp.zeros((1, pad1.shape[1]), jnp.float32)
    pad2[0:1, :] = jnp.zeros((1, pad2.shape[1]), jnp.float32)
    pad2[P + 1:P + 2, :] = jnp.zeros((1, pad2.shape[1]), jnp.float32)

    def conv3x3_relu(z, pad, w_ref, b_ref):
        # 3x3 SAME conv as three banded matmuls over row-packed data:
        #   out[p] = relu( sum_dy z[p+dy-1] @ W[dy] + b )
        pad[1:P + 1, :] = z
        acc = jnp.dot(pad[0:P, :], w_ref[0], preferred_element_type=jnp.float32)
        acc += jnp.dot(pad[1:P + 1, :], w_ref[1], preferred_element_type=jnp.float32)
        acc += jnp.dot(pad[2:P + 2, :], w_ref[2], preferred_element_type=jnp.float32)
        return jnp.maximum(acc + b_ref[...], 0.0)

    h1 = conv3x3_relu(xu, pad1, w1_ref, b1_ref)      # (P, Q*Cmid)
    h2 = conv3x3_relu(h1, pad2, w2_ref, b2_ref)      # (P, Q*Cout)

    o_ref[0] = h2.astype(o_ref.dtype)                # lane-dense (P, Q*Cout) store


def decoder_block_v2(x_nchw, w1, b1, w2, b2):
    """x_nchw: (B, Cin, H, W); w1: (3,3,Cin,Cmid) HWIO; w2: (3,3,Cmid,Cout) HWIO."""
    B, Cin, H, W = x_nchw.shape
    Cmid = w1.shape[3]
    Cout = w2.shape[3]
    P, Q = 2 * H, 2 * W

    # Small pre-upsample input, packed as (B, H, W*Cin); the 4x-larger upsampled tensor is never
    # materialized in HBM -- the upsample runs inside the kernel.
    x_packed = jnp.transpose(x_nchw, (0, 2, 3, 1)).reshape(B, H, W * Cin)

    ah = jnp.asarray(_up2_matrix(H))                                   # (P, H)
    aw = jnp.asarray(_up2_matrix(W))                                   # (Q, W)
    awp = jnp.kron(aw.T, jnp.eye(Cin, dtype=jnp.float32))              # (W*Cin, Q*Cin)

    w1b = _band_conv_matrix(w1, Q)                                     # (3, Q*Cin,  Q*Cmid)
    w2b = _band_conv_matrix(w2, Q)                                     # (3, Q*Cmid, Q*Cout)
    b1r = jnp.tile(b1, Q).reshape(1, Q * Cmid)
    b2r = jnp.tile(b2, Q).reshape(1, Q * Cout)

    out_packed = pl.pallas_call(
        _decoder_kernel,
        out_shape=jax.ShapeDtypeStruct((B, P, Q * Cout), jnp.float32),
        grid_spec=pltpu.PrefetchScalarGridSpec(
            num_scalar_prefetch=0,
            grid=(B,),
            in_specs=[
                pl.BlockSpec((1, H, W * Cin), lambda b: (b, 0, 0)),        # input (per batch)
                pl.BlockSpec((P, H), lambda b: (0, 0)),                    # height resample
                pl.BlockSpec((W * Cin, Q * Cin), lambda b: (0, 0)),        # packed width resample
                pl.BlockSpec((3, Q * Cin, Q * Cmid), lambda b: (0, 0, 0)),  # conv1 band weights
                pl.BlockSpec((1, Q * Cmid), lambda b: (0, 0)),             # conv1 bias (packed)
                pl.BlockSpec((3, Q * Cmid, Q * Cout), lambda b: (0, 0, 0)),  # conv2 band weights
                pl.BlockSpec((1, Q * Cout), lambda b: (0, 0)),             # conv2 bias (packed)
            ],
            out_specs=pl.BlockSpec((1, P, Q * Cout), lambda b: (b, 0, 0)),
            scratch_shapes=[
                pltpu.VMEM((P + 2, Q * Cin), jnp.float32),    # conv1 row-halo buffer
                pltpu.VMEM((P + 2, Q * Cmid), jnp.float32),   # conv2 row-halo buffer
            ],
        ),
        compiler_params=pltpu.CompilerParams(
            dimension_semantics=("parallel",),                # batch elems independent (v7x 2 TCs)
        ),
    )(x_packed, ah, awp, w1b, b1r, w2b, b2r)

    out_nhwc = out_packed.reshape(B, P, Q, Cout)
    return jnp.transpose(out_nhwc, (0, 3, 1, 2))              # back to NCHW


def _reference(x_nchw, w1, b1, w2, b2):
    """Pure-JAX reference matching the PyTorch forward (NCHW)."""
    H, W = x_nchw.shape[2], x_nchw.shape[3]
    ah = jnp.asarray(_up2_matrix(H))
    aw = jnp.asarray(_up2_matrix(W))
    xu = jnp.einsum('ph,bchw->bcpw', ah, x_nchw, precision=lax.Precision.HIGHEST)
    xu = jnp.einsum('qw,bcpw->bcpq', aw, xu, precision=lax.Precision.HIGHEST)
    dn = ('NCHW', 'HWIO', 'NCHW')
    y = lax.conv_general_dilated(xu, w1, (1, 1), 'SAME', dimension_numbers=dn,
                                 precision=lax.Precision.HIGHEST)
    y = jnp.maximum(y + b1[None, :, None, None], 0.0)
    y = lax.conv_general_dilated(y, w2, (1, 1), 'SAME', dimension_numbers=dn,
                                 precision=lax.Precision.HIGHEST)
    y = jnp.maximum(y + b2[None, :, None, None], 0.0)
    return y


if __name__ == "__main__":
    key = jax.random.PRNGKey(0)
    k_x, k_w1, k_b1, k_w2, k_b2 = jax.random.split(key, 5)

    # DecoderBlockV2(in_channels=4, middle_channels=8, out_channels=4)
    B, Cin, H, W = 2, 4, 16, 16
    Cmid, Cout = 8, 4

    x = jax.random.normal(k_x, (B, Cin, H, W), dtype=jnp.float32)
    w1 = 0.2 * jax.random.normal(k_w1, (3, 3, Cin, Cmid), dtype=jnp.float32)
    b1 = 0.1 * jax.random.normal(k_b1, (Cmid,), dtype=jnp.float32)
    w2 = 0.2 * jax.random.normal(k_w2, (3, 3, Cmid, Cout), dtype=jnp.float32)
    b2 = 0.1 * jax.random.normal(k_b2, (Cout,), dtype=jnp.float32)

    out = jax.block_until_ready(decoder_block_v2(x, w1, b1, w2, b2))
    ref = jax.block_until_ready(_reference(x, w1, b1, w2, b2))

    assert out.shape == (B, Cout, 2 * H, 2 * W), out.shape
    np.testing.assert_allclose(np.asarray(out), np.asarray(ref), rtol=1e-3, atol=1e-3)

    print("KERNEL_OK")
</pallas_src>

<mosaic_0001>
module attributes {stable_mosaic.version = 11 : i64} {
  func.func @_decoder_kernel(%arg0: i32, %arg1: memref<1x16x64xf32, #tpu.memory_space<vmem>>, %arg2: memref<32x16xf32, #tpu.memory_space<vmem>>, %arg3: memref<64x128xf32, #tpu.memory_space<vmem>>, %arg4: memref<3x128x256xf32, #tpu.memory_space<vmem>>, %arg5: memref<1x256xf32, #tpu.memory_space<vmem>>, %arg6: memref<3x256x128xf32, #tpu.memory_space<vmem>>, %arg7: memref<1x128xf32, #tpu.memory_space<vmem>>, %arg8: memref<1x32x128xf32, #tpu.memory_space<vmem>>, %arg9: memref<34x128xf32, #tpu.memory_space<vmem>>, %arg10: memref<34x256xf32, #tpu.memory_space<vmem>>) attributes {dimension_semantics = [#tpu.dimension_semantics<parallel>], iteration_bounds = array<i64: 2>, scalar_prefetch = 0 : i64, scratch_operands = 2 : i64, tpu.core_type = #tpu.core_type<tc>, window_params = [{transform_indices = @transform_0, window_bounds = array<i64: 1, 16, 64>}, {pipeline_mode = #tpu.pipeline_mode<synchronous>, transform_indices = @transform_1, window_bounds = array<i64: 32, 16>}, {pipeline_mode = #tpu.pipeline_mode<synchronous>, transform_indices = @transform_2, window_bounds = array<i64: 64, 128>}, {pipeline_mode = #tpu.pipeline_mode<synchronous>, transform_indices = @transform_3, window_bounds = array<i64: 3, 128, 256>}, {pipeline_mode = #tpu.pipeline_mode<synchronous>, transform_indices = @transform_4, window_bounds = array<i64: 1, 256>}, {pipeline_mode = #tpu.pipeline_mode<synchronous>, transform_indices = @transform_5, window_bounds = array<i64: 3, 256, 128>}, {pipeline_mode = #tpu.pipeline_mode<synchronous>, transform_indices = @transform_6, window_bounds = array<i64: 1, 128>}, {transform_indices = @transform_7, window_bounds = array<i64: 1, 32, 128>}]} {
    %c0 = arith.constant 0 : index
    %c0_0 = arith.constant 0 : index
    %0 = vector.load %arg2[%c0, %c0_0] : memref<32x16xf32, #tpu.memory_space<vmem>>, vector<32x16xf32>
    %c0_1 = arith.constant 0 : index
    %c0_2 = arith.constant 0 : index
    %c0_3 = arith.constant 0 : index
    %1 = vector.load %arg1[%c0_1, %c0_2, %c0_3] : memref<1x16x64xf32, #tpu.memory_space<vmem>>, vector<1x16x64xf32>
    %2 = vector.shape_cast %1 : vector<1x16x64xf32> to vector<16x64xf32>
    %cst = arith.constant dense<0.000000e+00> : vector<32x64xf32>
    %3 = tpu.matmul %0, %2, %cst {dimension_numbers = #tpu.dot_dimension_numbers<[1], [0], [0], [1], [0, 0, 1, 1], [], []>} : vector<32x16xf32>, vector<16x64xf32>, vector<32x64xf32> -> vector<32x64xf32>
    %c0_4 = arith.constant 0 : index
    %c0_5 = arith.constant 0 : index
    %4 = vector.load %arg3[%c0_4, %c0_5] : memref<64x128xf32, #tpu.memory_space<vmem>>, vector<64x128xf32>
    %cst_6 = arith.constant dense<0.000000e+00> : vector<32x128xf32>
    %5 = tpu.matmul %3, %4, %cst_6 {dimension_numbers = #tpu.dot_dimension_numbers<[1], [0], [0], [1], [0, 0, 1, 1], [], []>} : vector<32x64xf32>, vector<64x128xf32>, vector<32x128xf32> -> vector<32x128xf32>
    %cst_7 = arith.constant 0.000000e+00 : f32
    %6 = vector.broadcast %cst_7 : f32 to vector<1x128xf32>
    %c0_8 = arith.constant 0 : index
    %c0_9 = arith.constant 0 : index
    %7 = vector.load %arg9[%c0_8, %c0_9] : memref<34x128xf32, #tpu.memory_space<vmem>>, vector<1x128xf32>
    tpu.vector_store %arg9[%c0_8, %c0_9], %6 {strides = array<i32>} : memref<34x128xf32, #tpu.memory_space<vmem>>, vector<1x128xf32>,
    %cst_10 = arith.constant 0.000000e+00 : f32
    %8 = vector.broadcast %cst_10 : f32 to vector<1x128xf32>
    %c33 = arith.constant 33 : index
    %c0_11 = arith.constant 0 : index
    %9 = vector.load %arg9[%c33, %c0_11] : memref<34x128xf32, #tpu.memory_space<vmem>>, vector<1x128xf32>
    tpu.vector_store %arg9[%c33, %c0_11], %8 {strides = array<i32>} : memref<34x128xf32, #tpu.memory_space<vmem>>, vector<1x128xf32>,
    %cst_12 = arith.constant 0.000000e+00 : f32
    %10 = vector.broadcast %cst_12 : f32 to vector<1x256xf32>
    %c0_13 = arith.constant 0 : index
    %c0_14 = arith.constant 0 : index
    %11 = vector.load %arg10[%c0_13, %c0_14] : memref<34x256xf32, #tpu.memory_space<vmem>>, vector<1x256xf32>
    tpu.vector_store %arg10[%c0_13, %c0_14], %10 {strides = array<i32>} : memref<34x256xf32, #tpu.memory_space<vmem>>, vector<1x256xf32>,
    %cst_15 = arith.constant 0.000000e+00 : f32
    %12 = vector.broadcast %cst_15 : f32 to vector<1x256xf32>
    %c33_16 = arith.constant 33 : index
    %c0_17 = arith.constant 0 : index
    %13 = vector.load %arg10[%c33_16, %c0_17] : memref<34x256xf32, #tpu.memory_space<vmem>>, vector<1x256xf32>
    tpu.vector_store %arg10[%c33_16, %c0_17], %12 {strides = array<i32>} : memref<34x256xf32, #tpu.memory_space<vmem>>, vector<1x256xf32>,
    %c1 = arith.constant 1 : index
    %c0_18 = arith.constant 0 : index
    %14 = vector.load %arg9[%c1, %c0_18] : memref<34x128xf32, #tpu.memory_space<vmem>>, vector<32x128xf32>
    tpu.vector_store %arg9[%c1, %c0_18], %5 {strides = array<i32>} : memref<34x128xf32, #tpu.memory_space<vmem>>, vector<32x128xf32>,
    %c0_19 = arith.constant 0 : index
    %c0_20 = arith.constant 0 : index
    %15 = vector.load %arg9[%c0_19, %c0_20] : memref<34x128xf32, #tpu.memory_space<vmem>>, vector<32x128xf32>
    %c0_21 = arith.constant 0 : index
    %c0_22 = arith.constant 0 : index
    %c0_23 = arith.constant 0 : index
    %16 = vector.load %arg4[%c0_21, %c0_22, %c0_23] : memref<3x128x256xf32, #tpu.memory_space<vmem>>, vector<1x128x256xf32>
    %17 = vector.shape_cast %16 : vector<1x128x256xf32> to vector<128x256xf32>
    %cst_24 = arith.constant dense<0.000000e+00> : vector<32x256xf32>
    %18 = tpu.matmul %15, %17, %cst_24 {dimension_numbers = #tpu.dot_dimension_numbers<[1], [0], [0], [1], [0, 0, 1, 1], [], []>} : vector<32x128xf32>, vector<128x256xf32>, vector<32x256xf32> -> vector<32x256xf32>
    %c1_25 = arith.constant 1 : index
    %c0_26 = arith.constant 0 : index
    %19 = vector.load %arg9[%c1_25, %c0_26] : memref<34x128xf32, #tpu.memory_space<vmem>>, vector<32x128xf32>
    %c1_27 = arith.constant 1 : index
    %c0_28 = arith.constant 0 : index
    %c0_29 = arith.constant 0 : index
    %20 = vector.load %arg4[%c1_27, %c0_28, %c0_29] : memref<3x128x256xf32, #tpu.memory_space<vmem>>, vector<1x128x256xf32>
    %21 = vector.shape_cast %20 : vector<1x128x256xf32> to vector<128x256xf32>
    %cst_30 = arith.constant dense<0.000000e+00> : vector<32x256xf32>
    %22 = tpu.matmul %19, %21, %cst_30 {dimension_numbers = #tpu.dot_dimension_numbers<[1], [0], [0], [1], [0, 0, 1, 1], [], []>} : vector<32x128xf32>, vector<128x256xf32>, vector<32x256xf32> -> vector<32x256xf32>
    %23 = arith.addf %18, %22 : vector<32x256xf32>
    %c2 = arith.constant 2 : index
    %c0_31 = arith.constant 0 : index
    %24 = vector.load %arg9[%c2, %c0_31] : memref<34x128xf32, #tpu.memory_space<vmem>>, vector<32x128xf32>
    %c2_32 = arith.constant 2 : index
    %c0_33 = arith.constant 0 : index
    %c0_34 = arith.constant 0 : index
    %25 = vector.load %arg4[%c2_32, %c0_33, %c0_34] : memref<3x128x256xf32, #tpu.memory_space<vmem>>, vector<1x128x256xf32>
    %26 = vector.shape_cast %25 : vector<1x128x256xf32> to vector<128x256xf32>
    %cst_35 = arith.constant dense<0.000000e+00> : vector<32x256xf32>
    %27 = tpu.matmul %24, %26, %cst_35 {dimension_numbers = #tpu.dot_dimension_numbers<[1], [0], [0], [1], [0, 0, 1, 1], [], []>} : vector<32x128xf32>, vector<128x256xf32>, vector<32x256xf32> -> vector<32x256xf32>
    %28 = arith.addf %23, %27 : vector<32x256xf32>
    %c0_36 = arith.constant 0 : index
    %c0_37 = arith.constant 0 : index
    %29 = vector.load %arg5[%c0_36, %c0_37] : memref<1x256xf32, #tpu.memory_space<vmem>>, vector<1x256xf32>
    %30 = vector.broadcast %29 : vector<1x256xf32> to vector<32x256xf32>
    %31 = arith.addf %28, %30 : vector<32x256xf32>
    %cst_38 = arith.constant 0.000000e+00 : f32
    %32 = vector.broadcast %cst_38 : f32 to vector<32x256xf32>
    %33 = arith.maximumf %31, %32 : vector<32x256xf32>
    %c1_39 = arith.constant 1 : index
    %c0_40 = arith.constant 0 : index
    %34 = vector.load %arg10[%c1_39, %c0_40] : memref<34x256xf32, #tpu.memory_space<vmem>>, vector<32x256xf32>
    tpu.vector_store %arg10[%c1_39, %c0_40], %33 {strides = array<i32>} : memref<34x256xf32, #tpu.memory_space<vmem>>, vector<32x256xf32>,
    %c0_41 = arith.constant 0 : index
    %c0_42 = arith.constant 0 : index
    %35 = vector.load %arg10[%c0_41, %c0_42] : memref<34x256xf32, #tpu.memory_space<vmem>>, vector<32x256xf32>
    %c0_43 = arith.constant 0 : index
    %c0_44 = arith.constant 0 : index
    %c0_45 = arith.constant 0 : index
    %36 = vector.load %arg6[%c0_43, %c0_44, %c0_45] : memref<3x256x128xf32, #tpu.memory_space<vmem>>, vector<1x256x128xf32>
    %37 = vector.shape_cast %36 : vector<1x256x128xf32> to vector<256x128xf32>
    %cst_46 = arith.constant dense<0.000000e+00> : vector<32x128xf32>
    %38 = tpu.matmul %35, %37, %cst_46 {dimension_numbers = #tpu.dot_dimension_numbers<[1], [0], [0], [1], [0, 0, 1, 1], [], []>} : vector<32x256xf32>, vector<256x128xf32>, vector<32x128xf32> -> vector<32x128xf32>
    %c1_47 = arith.constant 1 : index
    %c0_48 = arith.constant 0 : index
    %39 = vector.load %arg10[%c1_47, %c0_48] : memref<34x256xf32, #tpu.memory_space<vmem>>, vector<32x256xf32>
    %c1_49 = arith.constant 1 : index
    %c0_50 = arith.constant 0 : index
    %c0_51 = arith.constant 0 : index
    %40 = vector.load %arg6[%c1_49, %c0_50, %c0_51] : memref<3x256x128xf32, #tpu.memory_space<vmem>>, vector<1x256x128xf32>
    %41 = vector.shape_cast %40 : vector<1x256x128xf32> to vector<256x128xf32>
    %cst_52 = arith.constant dense<0.000000e+00> : vector<32x128xf32>
    %42 = tpu.matmul %39, %41, %cst_52 {dimension_numbers = #tpu.dot_dimension_numbers<[1], [0], [0], [1], [0, 0, 1, 1], [], []>} : vector<32x256xf32>, vector<256x128xf32>, vector<32x128xf32> -> vector<32x128xf32>
    %43 = arith.addf %38, %42 : vector<32x128xf32>
    %c2_53 = arith.constant 2 : index
    %c0_54 = arith.constant 0 : index
    %44 = vector.load %arg10[%c2_53, %c0_54] : memref<34x256xf32, #tpu.memory_space<vmem>>, vector<32x256xf32>
    %c2_55 = arith.constant 2 : index
    %c0_56 = arith.constant 0 : index
    %c0_57 = arith.constant 0 : index
    %45 = vector.load %arg6[%c2_55, %c0_56, %c0_57] : memref<3x256x128xf32, #tpu.memory_space<vmem>>, vector<1x256x128xf32>
    %46 = vector.shape_cast %45 : vector<1x256x128xf32> to vector<256x128xf32>
    %cst_58 = arith.constant dense<0.000000e+00> : vector<32x128xf32>
    %47 = tpu.matmul %44, %46, %cst_58 {dimension_numbers = #tpu.dot_dimension_numbers<[1], [0], [0], [1], [0, 0, 1, 1], [], []>} : vector<32x256xf32>, vector<256x128xf32>, vector<32x128xf32> -> vector<32x128xf32>
    %48 = arith.addf %43, %47 : vector<32x128xf32>
    %c0_59 = arith.constant 0 : index
    %c0_60 = arith.constant 0 : index
    %49 = vector.load %arg7[%c0_59, %c0_60] : memref<1x128xf32, #tpu.memory_space<vmem>>, vector<1x128xf32>
    %50 = vector.broadcast %49 : vector<1x128xf32> to vector<32x128xf32>
    %51 = arith.addf %48, %50 : vector<32x128xf32>
    %cst_61 = arith.constant 0.000000e+00 : f32
    %52 = vector.broadcast %cst_61 : f32 to vector<32x128xf32>
    %53 = arith.maximumf %51, %52 : vector<32x128xf32>
    %c0_62 = arith.constant 0 : index
    %c0_63 = arith.constant 0 : index
    %c0_64 = arith.constant 0 : index
    %54 = vector.load %arg8[%c0_62, %c0_63, %c0_64] : memref<1x32x128xf32, #tpu.memory_space<vmem>>, vector<1x32x128xf32>
    %55 = vector.shape_cast %54 : vector<1x32x128xf32> to vector<32x128xf32>
    %56 = vector.shape_cast %53 : vector<32x128xf32> to vector<1x32x128xf32>
    tpu.vector_store %arg8[%c0_62, %c0_63, %c0_64], %56 {strides = array<i32>} : memref<1x32x128xf32, #tpu.memory_space<vmem>>, vector<1x32x128xf32>,
    return
  }
  func.func @transform_0(%arg0: i32) -> (i32, i32, i32) {
    %c0_i32 = arith.constant 0 : i32
    %c0_i32_0 = arith.constant 0 : i32
    %c0_i32_1 = arith.constant 0 : i32
    return %arg0, %c0_i32, %c0_i32_0 : i32, i32, i32
  }
  func.func @transform_1(%arg0: i32) -> (i32, i32) {
    %c0_i32 = arith.constant 0 : i32
    %c0_i32_0 = arith.constant 0 : i32
    %c0_i32_1 = arith.constant 0 : i32
    return %c0_i32, %c0_i32_0 : i32, i32
  }
  func.func @transform_2(%arg0: i32) -> (i32, i32) {
    %c0_i32 = arith.constant 0 : i32
    %c0_i32_0 = arith.constant 0 : i32
    %c0_i32_1 = arith.constant 0 : i32
    return %c0_i32, %c0_i32_0 : i32, i32
  }
  func.func @transform_3(%arg0: i32) -> (i32, i32, i32) {
    %c0_i32 = arith.constant 0 : i32
    %c0_i32_0 = arith.constant 0 : i32
    %c0_i32_1 = arith.constant 0 : i32
    %c0_i32_2 = arith.constant 0 : i32
    return %c0_i32, %c0_i32_0, %c0_i32_1 : i32, i32, i32
  }
  func.func @transform_4(%arg0: i32) -> (i32, i32) {
    %c0_i32 = arith.constant 0 : i32
    %c0_i32_0 = arith.constant 0 : i32
    %c0_i32_1 = arith.constant 0 : i32
    return %c0_i32, %c0_i32_0 : i32, i32
  }
  func.func @transform_5(%arg0: i32) -> (i32, i32, i32) {
    %c0_i32 = arith.constant 0 : i32
    %c0_i32_0 = arith.constant 0 : i32
    %c0_i32_1 = arith.constant 0 : i32
    %c0_i32_2 = arith.constant 0 : i32
    return %c0_i32, %c0_i32_0, %c0_i32_1 : i32, i32, i32
  }
  func.func @transform_6(%arg0: i32) -> (i32, i32) {
    %c0_i32 = arith.constant 0 : i32
    %c0_i32_0 = arith.constant 0 : i32
    %c0_i32_1 = arith.constant 0 : i32
    return %c0_i32, %c0_i32_0 : i32, i32
  }
  func.func @transform_7(%arg0: i32) -> (i32, i32, i32) {
    %c0_i32 = arith.constant 0 : i32
    %c0_i32_0 = arith.constant 0 : i32
    %c0_i32_1 = arith.constant 0 : i32
    return %arg0, %c0_i32, %c0_i32_0 : i32, i32, i32
  }
}

</mosaic_0001>

<llo_original>
// kernel: tpu_custom_call.1
$region0: #{tpu_custom_call.1}
  #allocation0 [shape = 'u32[]', space=smem, size = 0x4, offset = 0x4, fixed_abs, tag = 'smem constant byte address 0x4 - core index']
  #allocation1 [shape = 'u32[144,128]{1,0:T(1,128)}', space=vmem, size = 0x12000, scoped, tag = 'internal scratch']
  #allocation2 [shape = 'f32[34,128]{1,0:T(8,128)}', space=vmem, size = 0x5000, scoped, tag = 'scratch operand']
  #allocation3 [shape = 'f32[34,256]{1,0:T(8,128)}', space=vmem, size = 0xa000, scoped, tag = 'scratch operand']
  %s0 = inlined_call_operand.vmem [shape: f32[2,16,64], index: 0, kind: input, shape index: {}]
  %s1 = inlined_call_operand.vmem [shape: f32[32,16], index: 1, kind: input, shape index: {}]
  %s2 = inlined_call_operand.hbm [shape: f32[64,128], index: 2, kind: input, shape index: {}]
  %s3 = inlined_call_operand.hbm [shape: f32[3,128,256], index: 3, kind: input, shape index: {}]
  %s4 = inlined_call_operand.vmem [shape: f32[1,256], index: 4, kind: input, shape index: {}]
  %s5 = inlined_call_operand.hbm [shape: f32[3,256,128], index: 5, kind: input, shape index: {}]
  %s6 = inlined_call_operand.vmem [shape: f32[1,128], index: 6, kind: input, shape index: {}]
  %s7 = inlined_call_operand.hbm [shape: f32[2,32,128], index: 7, kind: output, shape index: {}]
  %s8 = sld [smem:[#allocation0]]
  $region73: #{tpu_custom_call.1} parent=0
    _
  %s10 = ssub.s32 1, %s8
  %s11 = scalar_select 0, %s10, %s8
  $region1: #{tpu_custom_call.1} parent=0
    #allocation4 [shape = 'u8[32768]{0}', space=vmem, size = 0x8000, scoped, tag = 'input window, operand 2, single buffered']
    #allocation5 [shape = 's32[2]{0}', space=sflag, size = 0x8, scoped, tag = 'scoped memory for tpu_custom_call.1']
    #allocation6 [shape = 's32[2]{0}', space=sflag, size = 0x8, scoped, tag = 'scoped memory for tpu_custom_call.1']
    #allocation7 [shape = 'u8[393216]{0}', space=vmem, size = 0x60000, scoped, tag = 'input window, operand 3, single buffered']
    #allocation8 [shape = 's32[1]{0}', space=sflag, size = 0x4, scoped, tag = 'scoped memory for tpu_custom_call.1']
    #allocation9 [shape = 'u8[393216]{0}', space=vmem, size = 0x60000, scoped, tag = 'input window, operand 5, single buffered']
    #allocation10 [shape = 'u8[32768]{0}', space=vmem, size = 0x8000, scoped, tag = 'output window, operand 0']
    %12 = vsyncpa [#allocation5], 0
    %13 = vsyncpa [#allocation8], 0
    %14 = vsyncpa [#allocation6], 0
    %s15 = scalar_lea.sflag [#allocation6], 1
    %16 = vsyncpa %s15, 0
    loop: start=0, step=1, limit=4
    $region2: #{tpu_custom_call.1} parent=1 // loop_pre_header
      _
    $region3: #{tpu_custom_call.1} parent=1 // loop_header
      %s18 = sphi 0, %s22
      %p19 = scmp.ge.s32.totalorder %s18, 4
      %s28 = sphi 0, %s30
      %s31 = sphi 0, %s28
      %s32 = sphi 0, %s31
      %s48 = sphi 0, %s32
      %s52 = sphi 0, %s52
      %s54 = sphi 0, %s52
      %s55 = sphi 0, %s54
      %s69 = sphi 0, %s55
      %s73 = sphi 0, %s73
      %s75 = sphi 0, %s73
      %s76 = sphi 0, %s75
      %s90 = sphi 0, %s76
      %s94 = sphi 0, %s94
      %s96 = sphi 0, %s94
      %s97 = sphi 0, %s96
      %s111 = sphi 0, %s97
      %s115 = sphi 0, %s115
      %s117 = sphi 0, %s115
      %s118 = sphi 0, %s117
      %s132 = sphi 0, %s118
      %s136 = sphi 0, %s136
      %s138 = sphi 0, %s136
      %s139 = sphi 0, %s138
      %s153 = sphi 0, %s139
      %s157 = sphi 0, %s157
      %s159 = sphi 0, %s157
      %s160 = sphi 0, %s159
      %s174 = sphi 0, %s160
      %s180 = sphi 0, %s182
      %s183 = sphi 0, %s180
      %s184 = sphi 0, %s183
      %s200 = sphi 0, %s184
    $region4: #{tpu_custom_call.1} parent=1 // loop_header_branch
      %21 = sbr.rel (%p19) target = $region8
    $region5: #{tpu_custom_call.1} parent=1 // loop_body
      %s23 = ssub.s32 %s18, 1
      %s24 = ssub.s32 %s18, 2
      %s25 = sadd.s32 %s18, 1
      %s26 = ssub.s32 %s18, %s25
      %p27 = scmp.eq.s32.totalorder %s26, 0
      %s29 = sadd.s32 %s28, 1
      %s30 = scalar_select %p27, %s28, %s29
      %p33 = pneg %p27
      %p34 = scmp.eq.s32.totalorder %s18, 1
      %p35 = por %p33, %p34
      %p36 = scmp.ne.s32.totalorder %s28, %s31
      %p37 = scmp.eq.s32.totalorder %s18, 0
      %p38 = por %p36, %p37
      %p39 = scmp.ne.s32.totalorder %s28, %s31
      %p40 = scmp.eq.s32.totalorder %s23, 1
      %p41 = por %p39, %p40
      %p42 = scmp.ne.s32.totalorder %s31, %s32
      %p43 = scmp.eq.s32.totalorder %s23, 0
      %p44 = por %p42, %p43
      %p45 = scmp.ne.s32.totalorder %s31, %s32
      %p46 = scmp.eq.s32.totalorder %s24, 1
      %p47 = por %p45, %p46
      %p49 = scmp.ne.s32.totalorder %s32, %s48
      %p50 = scmp.eq.s32.totalorder %s24, 0
      %p51 = por %p49, %p50
      %s53 = sadd.s32 %s52, 1
      %p56 = scmp.eq.s32.totalorder %s18, 1
      %p57 = scmp.ne.s32.totalorder %s52, %s54
      %p58 = scmp.eq.s32.totalorder %s18, 0
      %p59 = por %p57, %p58
      %p60 = scmp.ne.s32.totalorder %s52, %s54
      %p61 = scmp.eq.s32.totalorder %s23, 1
      %p62 = por %p60, %p61
      %p63 = scmp.ne.s32.totalorder %s54, %s55
      %p64 = scmp.eq.s32.totalorder %s23, 0
      %p65 = por %p63, %p64
      %p66 = scmp.ne.s32.totalorder %s54, %s55
      %p67 = scmp.eq.s32.totalorder %s24, 1
      %p68 = por %p66, %p67
      %p70 = scmp.ne.s32.totalorder %s55, %s69
      %p71 = scmp.eq.s32.totalorder %s24, 0
      %p72 = por %p70, %p71
      %s74 = sadd.s32 %s73, 1
      %p77 = scmp.eq.s32.totalorder %s18, 1
      %p78 = scmp.ne.s32.totalorder %s73, %s75
      %p79 = scmp.eq.s32.totalorder %s18, 0
      %p80 = por %p78, %p79
      %p81 = scmp.ne.s32.totalorder %s73, %s75
      %p82 = scmp.eq.s32.totalorder %s23, 1
      %p83 = por %p81, %p82
      %p84 = scmp.ne.s32.totalorder %s75, %s76
      %p85 = scmp.eq.s32.totalorder %s23, 0
      %p86 = por %p84, %p85
      %p87 = scmp.ne.s32.totalorder %s75, %s76
      %p88 = scmp.eq.s32.totalorder %s24, 1
      %p89 = por %p87, %p88
      %p91 = scmp.ne.s32.totalorder %s76, %s90
      %p92 = scmp.eq.s32.totalorder %s24, 0
      %p93 = por %p91, %p92
      %s95 = sadd.s32 %s94, 1
      %p98 = scmp.eq.s32.totalorder %s18, 1
      %p99 = scmp.ne.s32.totalorder %s94, %s96
      %p100 = scmp.eq.s32.totalorder %s18, 0
      %p101 = por %p99, %p100
      %p102 = scmp.ne.s32.totalorder %s94, %s96
      %p103 = scmp.eq.s32.totalorder %s23, 1
      %p104 = por %p102, %p103
      %p105 = scmp.ne.s32.totalorder %s96, %s97
      %p106 = scmp.eq.s32.totalorder %s23, 0
      %p107 = por %p105, %p106
      %p108 = scmp.ne.s32.totalorder %s96, %s97
      %p109 = scmp.eq.s32.totalorder %s24, 1
      %p110 = por %p108, %p109
      %p112 = scmp.ne.s32.totalorder %s97, %s111
      %p113 = scmp.eq.s32.totalorder %s24, 0
      %p114 = por %p112, %p113
      %s116 = sadd.s32 %s115, 1
      %p119 = scmp.eq.s32.totalorder %s18, 1
      %p120 = scmp.ne.s32.totalorder %s115, %s117
      %p121 = scmp.eq.s32.totalorder %s18, 0
      %p122 = por %p120, %p121
      %p123 = scmp.ne.s32.totalorder %s115, %s117
      %p124 = scmp.eq.s32.totalorder %s23, 1
      %p125 = por %p123, %p124
      %p126 = scmp.ne.s32.totalorder %s117, %s118
      %p127 = scmp.eq.s32.totalorder %s23, 0
      %p128 = por %p126, %p127
      %p129 = scmp.ne.s32.totalorder %s117, %s118
      %p130 = scmp.eq.s32.totalorder %s24, 1
      %p131 = por %p129, %p130
      %p133 = scmp.ne.s32.totalorder %s118, %s132
      %p134 = scmp.eq.s32.totalorder %s24, 0
      %p135 = por %p133, %p134
      %s137 = sadd.s32 %s136, 1
      %p140 = scmp.eq.s32.totalorder %s18, 1
      %p141 = scmp.ne.s32.totalorder %s136, %s138
      %p142 = scmp.eq.s32.totalorder %s18, 0
      %p143 = por %p141, %p142
      %p144 = scmp.ne.s32.totalorder %s136, %s138
      %p145 = scmp.eq.s32.totalorder %s23, 1
      %p146 = por %p144, %p145
      %p147 = scmp.ne.s32.totalorder %s138, %s139
      %p148 = scmp.eq.s32.totalorder %s23, 0
      %p149 = por %p147, %p148
      %p150 = scmp.ne.s32.totalorder %s138, %s139
      %p151 = scmp.eq.s32.totalorder %s24, 1
      %p152 = por %p150, %p151
      %p154 = scmp.ne.s32.totalorder %s139, %s153
      %p155 = scmp.eq.s32.totalorder %s24, 0
      %p156 = por %p154, %p155
      %s158 = sadd.s32 %s157, 1
      %p161 = scmp.eq.s32.totalorder %s18, 1
      %p162 = scmp.ne.s32.totalorder %s157, %s159
      %p163 = scmp.eq.s32.totalorder %s18, 0
      %p164 = por %p162, %p163
      %p165 = scmp.ne.s32.totalorder %s157, %s159
      %p166 = scmp.eq.s32.totalorder %s23, 1
      %p167 = por %p165, %p166
      %p168 = scmp.ne.s32.totalorder %s159, %s160
      %p169 = scmp.eq.s32.totalorder %s23, 0
      %p170 = por %p168, %p169
      %p171 = scmp.ne.s32.totalorder %s159, %s160
      %p172 = scmp.eq.s32.totalorder %s24, 1
      %p173 = por %p171, %p172
      %p175 = scmp.ne.s32.totalorder %s160, %s174
      %p176 = scmp.eq.s32.totalorder %s24, 0
      %p177 = por %p175, %p176
      %s178 = ssub.s32 %s18, %s25
      %p179 = scmp.eq.s32.totalorder %s178, 0
      %s181 = sadd.s32 %s180, 1
      %s182 = scalar_select %p179, %s180, %s181
      %p185 = pneg %p179
      %p186 = scmp.eq.s32.totalorder %s18, 1
      %p187 = por %p185, %p186
      %p188 = scmp.ne.s32.totalorder %s180, %s183
      %p189 = scmp.eq.s32.totalorder %s18, 0
      %p190 = por %p188, %p189
      %p191 = scmp.ne.s32.totalorder %s180, %s183
      %p192 = scmp.eq.s32.totalorder %s23, 1
      %p193 = por %p191, %p192
      %p194 = scmp.ne.s32.totalorder %s183, %s184
      %p195 = scmp.eq.s32.totalorder %s23, 0
      %p196 = por %p194, %p195
      %p197 = scmp.ne.s32.totalorder %s183, %s184
      %p198 = scmp.eq.s32.totalorder %s24, 1
      %p199 = por %p197, %p198
      %p201 = scmp.ne.s32.totalorder %s184, %s200
      %p202 = scmp.eq.s32.totalorder %s24, 0
      %p203 = por %p201, %p202
      %p204 = scmp.le.s32.totalorder 1, %s18
      %p205 = scmp.lt.s32.totalorder %s18, 3
      %p206 = pnand %p204, %p205
      %p207 = pneg %p206
      // Predicated region
      $region9: #{tpu_custom_call.1} parent=5 // pred_check
        _
      $region10: #{tpu_custom_call.1} parent=5 // pred_check_branch
        %209 = sbr.rel (%p206) target = $region12
      $region11: #{tpu_custom_call.1} parent=5 // pred_region
        %s210 = ssub.s32 %s18, 1
        // Predicated region
        $region13: #{tpu_custom_call.1} parent=11 // pred_check
          %p211 = pneg %p65
        $region14: #{tpu_custom_call.1} parent=11 // pred_check_branch
          %213 = sbr.rel (%p211) target = $region16
        $region15: #{tpu_custom_call.1} parent=11 // pred_region
          _
        $region16: #{tpu_custom_call.1} parent=11 // pred_fallthru
          _
        // Predicated region
        $region17: #{tpu_custom_call.1} parent=11 // pred_check
          %p214 = pneg %p86
        $region18: #{tpu_custom_call.1} parent=11 // pred_check_branch
          %216 = sbr.rel (%p214) target = $region20
        $region19: #{tpu_custom_call.1} parent=11 // pred_region
          %s218 = ssub.s32 1024, 1024
          %219 = vsyncadd [#allocation5], %s218
          %s220 = sshll.u32 [#allocation4], 4
          %s221 = int_to_ptr.vmem [resolvable:$true] %s220
          %226 = dma.hbm_to_vmem [thread:$0]  %s2, 1024, %s221, [#allocation5], 128, 128, 8
        $region20: #{tpu_custom_call.1} parent=11 // pred_fallthru
          _
        // Predicated region
        $region21: #{tpu_custom_call.1} parent=11 // pred_check
          %p227 = pneg %p107
        $region22: #{tpu_custom_call.1} parent=11 // pred_check_branch
          %229 = sbr.rel (%p227) target = $region24
        $region23: #{tpu_custom_call.1} parent=11 // pred_region
          %s231 = ssub.s32 12288, 12288
          %232 = vsyncadd [#allocation8], %s231
          %s233 = sshll.u32 [#allocation7], 4
          %s234 = int_to_ptr.vmem [resolvable:$true] %s233
          %239 = dma.hbm_to_vmem [thread:$0]  %s3, 12288, %s234, [#allocation8], 256, 256, 16
        $region24: #{tpu_custom_call.1} parent=11 // pred_fallthru
          _
        // Predicated region
        $region25: #{tpu_custom_call.1} parent=11 // pred_check
          %p240 = pneg %p128
        $region26: #{tpu_custom_call.1} parent=11 // pred_check_branch
          %242 = sbr.rel (%p240) target = $region28
        $region27: #{tpu_custom_call.1} parent=11 // pred_region
          _
        $region28: #{tpu_custom_call.1} parent=11 // pred_fallthru
          _
        // Predicated region
        $region29: #{tpu_custom_call.1} parent=11 // pred_check
          %p243 = pneg %p149
        $region30: #{tpu_custom_call.1} parent=11 // pred_check_branch
          %245 = sbr.rel (%p243) target = $region32
        $region31: #{tpu_custom_call.1} parent=11 // pred_region
          %s247 = ssub.s32 12288, 12288
          %248 = vsyncadd [#allocation8], %s247
          %s249 = sshll.u32 [#allocation9], 4
          %s250 = int_to_ptr.vmem [resolvable:$true] %s249
          %255 = dma.hbm_to_vmem [thread:$0]  %s5, 12288, %s250, [#allocation8], 128, 128, 8
        $region32: #{tpu_custom_call.1} parent=11 // pred_fallthru
          _
        // Predicated region
        $region33: #{tpu_custom_call.1} parent=11 // pred_check
          %p256 = pneg %p170
        $region34: #{tpu_custom_call.1} parent=11 // pred_check_branch
          %258 = sbr.rel (%p256) target = $region36
        $region35: #{tpu_custom_call.1} parent=11 // pred_region
          _
        $region36: #{tpu_custom_call.1} parent=11 // pred_fallthru
          _
      $region12: #{tpu_custom_call.1} parent=5 // pred_fallthru
        _
      %p259 = scmp.lt.s32.totalorder %s18, 2
      // Predicated region
      $region37: #{tpu_custom_call.1} parent=5 // pred_check
        %p260 = pneg %p259
      $region38: #{tpu_custom_call.1} parent=5 // pred_check_branch
        %262 = sbr.rel (%p260) target = $region40
      $region39: #{tpu_custom_call.1} parent=5 // pred_region
        // Predicated region
        $region41: #{tpu_custom_call.1} parent=39 // pred_check
          %p263 = pneg %p38
        $region42: #{tpu_custom_call.1} parent=39 // pred_check_branch
          %265 = sbr.rel (%p263) target = $region44
        $region43: #{tpu_custom_call.1} parent=39 // pred_region
          %p266 = scmp.lt.s32.totalorder %s18, 1
          %s267 = scalar_select %p266, %s18, 1
          %s268 = smul.addr %s267, 2
          %s269 = smul.addr %s268, 8
          %s270 = scalar_lea.vmem %s0, %s269
        $region44: #{tpu_custom_call.1} parent=39 // pred_fallthru
          _
      $region40: #{tpu_custom_call.1} parent=5 // pred_fallthru
        _
      %p271 = scmp.le.s32.totalorder 1, %s18
      %p272 = scmp.lt.s32.totalorder %s18, 3
      %p273 = pnand %p271, %p272
      %p274 = pneg %p273
      // Predicated region
      $region45: #{tpu_custom_call.1} parent=5 // pred_check
        _
      $region46: #{tpu_custom_call.1} parent=5 // pred_check_branch
        %276 = sbr.rel (%p273) target = $region48
      $region47: #{tpu_custom_call.1} parent=5 // pred_region
        %s277 = ssub.s32 %s18, 1
        // Predicated region
        $region49: #{tpu_custom_call.1} parent=47 // pred_check
          %p278 = pneg %p86
        $region50: #{tpu_custom_call.1} parent=47 // pred_check_branch
          %280 = sbr.rel (%p278) target = $region52
        $region51: #{tpu_custom_call.1} parent=47 // pred_region
          %281 = dma.done [#allocation5], 1024
        $region52: #{tpu_custom_call.1} parent=47 // pred_fallthru
          _
        // Predicated region
        $region53: #{tpu_custom_call.1} parent=47 // pred_check
          %p282 = pneg %p107
        $region54: #{tpu_custom_call.1} parent=47 // pred_check_branch
          %284 = sbr.rel (%p282) target = $region56
        $region55: #{tpu_custom_call.1} parent=47 // pred_region
          %285 = dma.done [#allocation8], 12288
        $region56: #{tpu_custom_call.1} parent=47 // pred_fallthru
          _
        // Predicated region
        $region57: #{tpu_custom_call.1} parent=47 // pred_check
          %p286 = pneg %p149
        $region58: #{tpu_custom_call.1} parent=47 // pred_check_branch
          %288 = sbr.rel (%p286) target = $region60
        $region59: #{tpu_custom_call.1} parent=47 // pred_region
          %289 = dma.done [#allocation8], 12288
        $region60: #{tpu_custom_call.1} parent=47 // pred_fallthru
          _
        %p290 = scmp.lt.s32.totalorder %s23, 1
        %s291 = scalar_select %p290, %s23, 1
        %s292 = smul.addr %s291, 2
        %s293 = smul.addr %s292, 8
        %s294 = scalar_lea.vmem %s0, %s293
        %p295 = pneg %p44
        %p296 = pneg %p41
        %p297 = pneg %p65
        %p298 = pneg %p62
        %p299 = pneg %p86
        %p300 = pneg %p83
        %p301 = pneg %p107
        %p302 = pneg %p104
        %p303 = pneg %p128
        %p304 = pneg %p125
        %p305 = pneg %p149
        %p306 = pneg %p146
        %p307 = pneg %p170
        %p308 = pneg %p167
        %p309 = pneg %p196
        %p310 = pneg %p193
        %s311 = sand.u32 %s183, 1
        %s312 = scalar_lea.sflag [#allocation6], %s311
        %s313 = sand.u32 %s183, 1
        %s314 = smul.addr %s313, 32
        %s315 = scalar_lea.vmem [#allocation10], %s314
        %p316 = scmp.lt.s32.totalorder %s23, 1
        %s317 = scalar_select %p316, %s23, 1
        %s318 = smul.addr %s317, 2
        %s319 = smul.addr %s318, 8
        %s320 = scalar_lea.vmem %s0, %s319
        %v321 = vld [vmem:[%s1] sm:$0xff]
        %v322 = vld [vmem:[%s1 + $0x8] sm:$0xff]
        %v323 = vld [vmem:[%s1 + $0x10] sm:$0xff]
        %v324 = vld [vmem:[%s1 + $0x18] sm:$0xff]
        %v325 = vld [vmem:[%s320] sm:$0xff]
        %v326 = vld [vmem:[%s320 + $0x8] sm:$0xff]
        %vm327 = vcmask 130048
        %v329 = vsel %vm327, %v321, 0
        %v332 = vsel %vm327, %v322, 0
        %v335 = vsel %vm327, %v323, 0
        %v338 = vsel %vm327, %v324, 0
        %340 = vmatprep.subr.mxu0 0.0
        %341 = vmatpush1.msra.mxu0 %v325
        %342 = vmatprep.subr.mxu0 0.0
        %343 = vmatpush1.msra.mxu0 %v326
        %344 = vmatprep.subr.mxu0 0.0
        %345 = vmatpush1.msra.mxu0 0.0
        %346 = vmatprep.subr.mxu0 0.0
        %347 = vmatpush1.msra.mxu0 0.0
        %348 = vmatprep.subr.mxu0 0.0
        %349 = vmatpush1.msra.mxu0 0.0
        %350 = vmatprep.subr.mxu0 0.0
        %351 = vmatpush1.msra.mxu0 0.0
        %352 = vmatprep.subr.mxu0 0.0
        %353 = vmatpush1.msra.mxu0 0.0
        %354 = vmatprep.subr.mxu0 0.0
        %355 = vmatpush1.msra.mxu0 0.0
        %356 = vmatprep.subr.mxu0 0.0
        %357 = vmatpush1.msra.mxu0 0.0
        %358 = vmatprep.subr.mxu0 0.0
        %359 = vmatpush1.msra.mxu0 0.0
        %360 = vmatprep.subr.mxu0 0.0
        %361 = vmatpush1.msra.mxu0 0.0
        %362 = vmatprep.subr.mxu0 0.0
        %363 = vmatpush1.msra.mxu0 0.0
        %364 = vmatprep.subr.mxu0 0.0
        %365 = vmatpush1.msra.mxu0 0.0
        %366 = vmatprep.subr.mxu0 0.0
        %367 = vmatpush1.msra.mxu0 0.0
        %368 = vmatprep.subr.mxu0 0.0
        %369 = vmatpush1.msra.mxu0 0.0
        %370 = vmatprep.subr.mxu0 0.0
        %371 = vmatpush1.msra.mxu0 0.0
        %372 = vmatprep.subr.mxu0 0.0
        %373 = vmatpush1.msra.mxu0 0.0
        %374 = vmatprep.subr.mxu0 0.0
        %375 = vmatpush1.msra.mxu0 0.0
        %376 = vmatprep.subr.mxu0 0.0
        %377 = vmatpush1.msra.mxu0 0.0
        %378 = vmatprep.subr.mxu0 0.0
        %379 = vmatpush1.msra.mxu0 0.0
        %380 = vmatprep.subr.mxu0 0.0
        %381 = vmatpush1.msra.mxu0 0.0
        %382 = vmatprep.subr.mxu0 0.0
        %383 = vmatpush1.msra.mxu0 0.0
        %384 = vmatprep.subr.mxu0 0.0
        %385 = vmatpush1.msra.mxu0 0.0
        %386 = vmatprep.subr.mxu0 0.0
        %387 = vmatpush1.msra.mxu0 0.0
        %388 = vmatprep.subr.mxu0 0.0
        %389 = vmatpush1.msra.mxu0 0.0
        %390 = vmatprep.subr.mxu0 0.0
        %391 = vmatpush1.msra.mxu0 0.0
        %392 = vmatprep.subr.mxu0 0.0
        %393 = vmatpush1.msra.mxu0 0.0
        %394 = vmatprep.subr.mxu0 0.0
        %395 = vmatpush1.msra.mxu0 0.0
        %396 = vmatprep.subr.mxu0 0.0
        %397 = vmatpush1.msra.mxu0 0.0
        %398 = vmatprep.subr.mxu0 0.0
        %399 = vmatpush1.msra.mxu0 0.0
        %400 = vmatprep.subr.mxu0 0.0
        %401 = vmatpush1.msra.mxu0 0.0
        %402 = vmatprep.subr.mxu0 0.0
        %403 = vmatpush1.msra.mxu0 0.0
        %404 = vmatprep.mubr.f32.mxu0 0.0
        %405 = vmatmul.mubr.f32.gmra.mrb[0].mxu0 %v329
        %v406 = vpop.f32.mrb[0].mxu0
        %v407 = vadd.f32 0.0, %v406
        %v408 = vpop.f32.mrb[0].mxu0
        %409 = vmatprep.mubr.f32.mxu0 0.0
        %410 = vmatmul.mubr.f32.gmra.mrb[0].mxu0 %v332
        %v411 = vpop.f32.mrb[0].mxu0
        %v412 = vadd.f32 0.0, %v411
        %v413 = vpop.f32.mrb[0].mxu0
        %414 = vmatprep.mubr.f32.mxu0 0.0
        %415 = vmatmul.mubr.f32.gmra.mrb[0].mxu0 %v335
        %v416 = vpop.f32.mrb[0].mxu0
        %v417 = vadd.f32 0.0, %v416
        %v418 = vpop.f32.mrb[0].mxu0
        %419 = vmatprep.mubr.f32.mxu0 0.0
        %420 = vmatmul.mubr.f32.gmra.mrb[0].mxu0 %v338
        %v421 = vpop.f32.mrb[0].mxu0
        %v422 = vadd.f32 0.0, %v421
        %v423 = vpop.f32.mrb[0].mxu0
        %424 = vdwg.mxu0
        %v425 = vld [vmem:[#allocation4] sm:$0xff]
        %v426 = vld [vmem:[#allocation4 + $0x8] sm:$0xff]
        %v427 = vld [vmem:[#allocation4 + $0x10] sm:$0xff]
        %v428 = vld [vmem:[#allocation4 + $0x18] sm:$0xff]
        %v429 = vld [vmem:[#allocation4 + $0x20] sm:$0xff]
        %v430 = vld [vmem:[#allocation4 + $0x28] sm:$0xff]
        %v431 = vld [vmem:[#allocation4 + $0x30] sm:$0xff]
        %v432 = vld [vmem:[#allocation4 + $0x38] sm:$0xff]
        %vm433 = vcmask 523264
        %v435 = vsel %vm433, %v407, 0
        %v438 = vsel %vm433, %v412, 0
        %v441 = vsel %vm433, %v417, 0
        %v444 = vsel %vm433, %v422, 0
        %446 = vmatprep.subr.mxu0 0.0
        %447 = vmatpush1.msra.mxu0 %v425
        %448 = vmatprep.subr.mxu0 0.0
        %449 = vmatpush1.msra.mxu0 %v426
        %450 = vmatprep.subr.mxu0 0.0
        %451 = vmatpush1.msra.mxu0 %v427
        %452 = vmatprep.subr.mxu0 0.0
        %453 = vmatpush1.msra.mxu0 %v428
        %454 = vmatprep.subr.mxu0 0.0
        %455 = vmatpush1.msra.mxu0 %v429
        %456 = vmatprep.subr.mxu0 0.0
        %457 = vmatpush1.msra.mxu0 %v430
        %458 = vmatprep.subr.mxu0 0.0
        %459 = vmatpush1.msra.mxu0 %v431
        %460 = vmatprep.subr.mxu0 0.0
        %461 = vmatpush1.msra.mxu0 %v432
        %462 = vmatprep.subr.mxu0 0.0
        %463 = vmatpush1.msra.mxu0 0.0
        %464 = vmatprep.subr.mxu0 0.0
        %465 = vmatpush1.msra.mxu0 0.0
        %466 = vmatprep.subr.mxu0 0.0
        %467 = vmatpush1.msra.mxu0 0.0
        %468 = vmatprep.subr.mxu0 0.0
        %469 = vmatpush1.msra.mxu0 0.0
        %470 = vmatprep.subr.mxu0 0.0
        %471 = vmatpush1.msra.mxu0 0.0
        %472 = vmatprep.subr.mxu0 0.0
        %473 = vmatpush1.msra.mxu0 0.0
        %474 = vmatprep.subr.mxu0 0.0
        %475 = vmatpush1.msra.mxu0 0.0
        %476 = vmatprep.subr.mxu0 0.0
        %477 = vmatpush1.msra.mxu0 0.0
        %478 = vmatprep.subr.mxu0 0.0
        %479 = vmatpush1.msra.mxu0 0.0
        %480 = vmatprep.subr.mxu0 0.0
        %481 = vmatpush1.msra.mxu0 0.0
        %482 = vmatprep.subr.mxu0 0.0
        %483 = vmatpush1.msra.mxu0 0.0
        %484 = vmatprep.subr.mxu0 0.0
        %485 = vmatpush1.msra.mxu0 0.0
        %486 = vmatprep.subr.mxu0 0.0
        %487 = vmatpush1.msra.mxu0 0.0
        %488 = vmatprep.subr.mxu0 0.0
        %489 = vmatpush1.msra.mxu0 0.0
        %490 = vmatprep.subr.mxu0 0.0
        %491 = vmatpush1.msra.mxu0 0.0
        %492 = vmatprep.subr.mxu0 0.0
        %493 = vmatpush1.msra.mxu0 0.0
        %494 = vmatprep.subr.mxu0 0.0
        %495 = vmatpush1.msra.mxu0 0.0
        %496 = vmatprep.subr.mxu0 0.0
        %497 = vmatpush1.msra.mxu0 0.0
        %498 = vmatprep.subr.mxu0 0.0
        %499 = vmatpush1.msra.mxu0 0.0
        %500 = vmatprep.subr.mxu0 0.0
        %501 = vmatpush1.msra.mxu0 0.0
        %502 = vmatprep.subr.mxu0 0.0
        %503 = vmatpush1.msra.mxu0 0.0
        %504 = vmatprep.subr.mxu0 0.0
        %505 = vmatpush1.msra.mxu0 0.0
        %506 = vmatprep.subr.mxu0 0.0
        %507 = vmatpush1.msra.mxu0 0.0
        %508 = vmatprep.subr.mxu0 0.0
        %509 = vmatpush1.msra.mxu0 0.0
        %510 = vmatprep.mubr.f32.mxu0 0.0
        %511 = vmatmul.mubr.f32.gmra.mrb[0].mxu0 %v435
        %v512 = vpop.f32.mrb[0].mxu0
        %v513 = vadd.f32 0.0, %v512
        %v514 = vpop.f32.mrb[0].mxu0
        %515 = vmatprep.mubr.f32.mxu0 0.0
        %516 = vmatmul.mubr.f32.gmra.mrb[0].mxu0 %v438
        %v517 = vpop.f32.mrb[0].mxu0
        %v518 = vadd.f32 0.0, %v517
        %v519 = vpop.f32.mrb[0].mxu0
        %520 = vmatprep.mubr.f32.mxu0 0.0
        %521 = vmatmul.mubr.f32.gmra.mrb[0].mxu0 %v441
        %v522 = vpop.f32.mrb[0].mxu0
        %v523 = vadd.f32 0.0, %v522
        %v524 = vpop.f32.mrb[0].mxu0
        %525 = vmatprep.mubr.f32.mxu0 0.0
        %526 = vmatmul.mubr.f32.gmra.mrb[0].mxu0 %v444
        %v527 = vpop.f32.mrb[0].mxu0
        %v528 = vadd.f32 0.0, %v527
        %v529 = vpop.f32.mrb[0].mxu0
        %530 = vdwg.mxu0
        %531 = vst [vmem:[#allocation2] sm:$0x1] 0.0
        %532 = vst [vmem:[#allocation2 + $0x21] sm:$0x1] 0.0
        %v533 = vlaneseq
        %vm534 = vcmp.ge.s32.totalorder %v533, 0
        %vm535 = vcmp.lt.s32.totalorder %v533, 256
        %vm536 = vmand %vm534, %vm535
        %537 = vst.msk [vmem:[#allocation3] ss:$8 sm:$0x3] %vm536, 0.0
        %538 = vst.msk [vmem:[#allocation3] ss:$8 sm:$0x0] %vm536, 0.0
        %s539 = scalar_lea.vmem [#allocation3], 65
        %540 = vst.msk [vmem:[%s539] ss:$8 sm:$0x3] %vm536, 0.0
        %541 = vst.msk [vmem:[%s539] ss:$8 sm:$0x0] %vm536, 0.0
        %542 = vst [vmem:[#allocation2 + $0x1] sm:$0xff] %v513
        %543 = vst [vmem:[#allocation2 + $0x9] sm:$0xff] %v518
        %544 = vst [vmem:[#allocation2 + $0x11] sm:$0xff] %v523
        %545 = vst [vmem:[#allocation2 + $0x19] sm:$0xff] %v528
        %v546 = vld [vmem:[#allocation2] sm:$0xff]
        %v547 = vld [vmem:[#allocation2 + $0x8] sm:$0xff]
        %v548 = vld [vmem:[#allocation2 + $0x10] sm:$0xff]
        %v549 = vld [vmem:[#allocation2 + $0x18] sm:$0xff]
        %v550 = vld [vmem:[#allocation7] sm:$0xff]
        %v551 = vld [vmem:[#allocation7 + $0x8] sm:$0xff]
        %v552 = vld [vmem:[#allocation7 + $0x10] sm:$0xff]
        %v553 = vld [vmem:[#allocation7 + $0x18] sm:$0xff]
        %v554 = vld [vmem:[#allocation7 + $0x20] sm:$0xff]
        %v555 = vld [vmem:[#allocation7 + $0x28] sm:$0xff]
        %v556 = vld [vmem:[#allocation7 + $0x30] sm:$0xff]
        %v557 = vld [vmem:[#allocation7 + $0x38] sm:$0xff]
        %v558 = vld [vmem:[#allocation7 + $0x40] sm:$0xff]
        %v559 = vld [vmem:[#allocation7 + $0x48] sm:$0xff]
        %v560 = vld [vmem:[#allocation7 + $0x50] sm:$0xff]
        %v561 = vld [vmem:[#allocation7 + $0x58] sm:$0xff]
        %v562 = vld [vmem:[#allocation7 + $0x60] sm:$0xff]
        %v563 = vld [vmem:[#allocation7 + $0x68] sm:$0xff]
        %v564 = vld [vmem:[#allocation7 + $0x70] sm:$0xff]
        %v565 = vld [vmem:[#allocation7 + $0x78] sm:$0xff]
        %v566 = vld [vmem:[#allocation7 + $0x80] sm:$0xff]
        %v567 = vld [vmem:[#allocation7 + $0x88] sm:$0xff]
        %v568 = vld [vmem:[#allocation7 + $0x90] sm:$0xff]
        %v569 = vld [vmem:[#allocation7 + $0x98] sm:$0xff]
        %v570 = vld [vmem:[#allocation7 + $0xa0] sm:$0xff]
        %v571 = vld [vmem:[#allocation7 + $0xa8] sm:$0xff]
        %v572 = vld [vmem:[#allocation7 + $0xb0] sm:$0xff]
        %v573 = vld [vmem:[#allocation7 + $0xb8] sm:$0xff]
        %v574 = vld [vmem:[#allocation7 + $0xc0] sm:$0xff]
        %v575 = vld [vmem:[#allocation7 + $0xc8] sm:$0xff]
        %v576 = vld [vmem:[#allocation7 + $0xd0] sm:$0xff]
        %v577 = vld [vmem:[#allocation7 + $0xd8] sm:$0xff]
        %v578 = vld [vmem:[#allocation7 + $0xe0] sm:$0xff]
        %v579 = vld [vmem:[#allocation7 + $0xe8] sm:$0xff]
        %v580 = vld [vmem:[#allocation7 + $0xf0] sm:$0xff]
        %v581 = vld [vmem:[#allocation7 + $0xf8] sm:$0xff]
        %v582 = vld [vmem:[#allocation2 + $0x1] sm:$0xff]
        %v583 = vld [vmem:[#allocation2 + $0x9] sm:$0xff]
        %v584 = vld [vmem:[#allocation2 + $0x11] sm:$0xff]
        %v585 = vld [vmem:[#allocation2 + $0x19] sm:$0xff]
        %s586 = scalar_lea.vmem [#allocation7], 256
        %v587 = vld [vmem:[%s586] sm:$0xff]
        %v588 = vld [vmem:[%s586 + $0x8] sm:$0xff]
        %v589 = vld [vmem:[%s586 + $0x10] sm:$0xff]
        %v590 = vld [vmem:[%s586 + $0x18] sm:$0xff]
        %v591 = vld [vmem:[%s586 + $0x20] sm:$0xff]
        %v592 = vld [vmem:[%s586 + $0x28] sm:$0xff]
        %v593 = vld [vmem:[%s586 + $0x30] sm:$0xff]
        %v594 = vld [vmem:[%s586 + $0x38] sm:$0xff]
        %v595 = vld [vmem:[%s586 + $0x40] sm:$0xff]
        %v596 = vld [vmem:[%s586 + $0x48] sm:$0xff]
        %v597 = vld [vmem:[%s586 + $0x50] sm:$0xff]
        %v598 = vld [vmem:[%s586 + $0x58] sm:$0xff]
        %v599 = vld [vmem:[%s586 + $0x60] sm:$0xff]
        %v600 = vld [vmem:[%s586 + $0x68] sm:$0xff]
        %v601 = vld [vmem:[%s586 + $0x70] sm:$0xff]
        %v602 = vld [vmem:[%s586 + $0x78] sm:$0xff]
        %v603 = vld [vmem:[%s586 + $0x80] sm:$0xff]
        %v604 = vld [vmem:[%s586 + $0x88] sm:$0xff]
        %v605 = vld [vmem:[%s586 + $0x90] sm:$0xff]
        %v606 = vld [vmem:[%s586 + $0x98] sm:$0xff]
        %v607 = vld [vmem:[%s586 + $0xa0] sm:$0xff]
        %v608 = vld [vmem:[%s586 + $0xa8] sm:$0xff]
        %v609 = vld [vmem:[%s586 + $0xb0] sm:$0xff]
        %v610 = vld [vmem:[%s586 + $0xb8] sm:$0xff]
        %v611 = vld [vmem:[%s586 + $0xc0] sm:$0xff]
        %v612 = vld [vmem:[%s586 + $0xc8] sm:$0xff]
        %v613 = vld [vmem:[%s586 + $0xd0] sm:$0xff]
        %v614 = vld [vmem:[%s586 + $0xd8] sm:$0xff]
        %v615 = vld [vmem:[%s586 + $0xe0] sm:$0xff]
        %v616 = vld [vmem:[%s586 + $0xe8] sm:$0xff]
        %v617 = vld [vmem:[%s586 + $0xf0] sm:$0xff]
        %v618 = vld [vmem:[%s586 + $0xf8] sm:$0xff]
        %619 = vmatprep.subr.mxu0 %v588
        %620 = vmatpush1.msra.mxu0 %v587
        %621 = vmatprep.subr.mxu0 %v590
        %622 = vmatpush1.msra.mxu0 %v589
        %623 = vmatprep.subr.mxu0 %v592
        %624 = vmatpush1.msra.mxu0 %v591
        %625 = vmatprep.subr.mxu0 %v594
        %626 = vmatpush1.msra.mxu0 %v593
        %627 = vmatprep.subr.mxu0 %v596
        %628 = vmatpush1.msra.mxu0 %v595
        %629 = vmatprep.subr.mxu0 %v598
        %630 = vmatpush1.msra.mxu0 %v597
        %631 = vmatprep.subr.mxu0 %v600
        %632 = vmatpush1.msra.mxu0 %v599
        %633 = vmatprep.subr.mxu0 %v602
        %634 = vmatpush1.msra.mxu0 %v601
        %635 = vmatprep.subr.mxu0 %v604
        %636 = vmatpush1.msra.mxu0 %v603
        %637 = vmatprep.subr.mxu0 %v606
        %638 = vmatpush1.msra.mxu0 %v605
        %639 = vmatprep.subr.mxu0 %v608
        %640 = vmatpush1.msra.mxu0 %v607
        %641 = vmatprep.subr.mxu0 %v610
        %642 = vmatpush1.msra.mxu0 %v609
        %643 = vmatprep.subr.mxu0 %v612
        %644 = vmatpush1.msra.mxu0 %v611
        %645 = vmatprep.subr.mxu0 %v614
        %646 = vmatpush1.msra.mxu0 %v613
        %647 = vmatprep.subr.mxu0 %v616
        %648 = vmatpush1.msra.mxu0 %v615
        %649 = vmatprep.subr.mxu0 %v618
        %650 = vmatpush1.msra.mxu0 %v617
        %651 = vmatprep.subr.mxu0 0.0
        %652 = vmatpush1.msra.mxu0 0.0
        %653 = vmatprep.subr.mxu0 0.0
        %654 = vmatpush1.msra.mxu0 0.0
        %655 = vmatprep.subr.mxu0 0.0
        %656 = vmatpush1.msra.mxu0 0.0
        %657 = vmatprep.subr.mxu0 0.0
        %658 = vmatpush1.msra.mxu0 0.0
        %659 = vmatprep.subr.mxu0 0.0
        %660 = vmatpush1.msra.mxu0 0.0
        %661 = vmatprep.subr.mxu0 0.0
        %662 = vmatpush1.msra.mxu0 0.0
        %663 = vmatprep.subr.mxu0 0.0
        %664 = vmatpush1.msra.mxu0 0.0
        %665 = vmatprep.subr.mxu0 0.0
        %666 = vmatpush1.msra.mxu0 0.0
        %667 = vmatprep.subr.mxu0 0.0
        %668 = vmatpush1.msra.mxu0 0.0
        %669 = vmatprep.subr.mxu0 0.0
        %670 = vmatpush1.msra.mxu0 0.0
        %671 = vmatprep.subr.mxu0 0.0
        %672 = vmatpush1.msra.mxu0 0.0
        %673 = vmatprep.subr.mxu0 0.0
        %674 = vmatpush1.msra.mxu0 0.0
        %675 = vmatprep.subr.mxu0 0.0
        %676 = vmatpush1.msra.mxu0 0.0
        %677 = vmatprep.subr.mxu0 0.0
        %678 = vmatpush1.msra.mxu0 0.0
        %679 = vmatprep.subr.mxu0 0.0
        %680 = vmatpush1.msra.mxu0 0.0
        %681 = vmatprep.subr.mxu0 0.0
        %682 = vmatpush1.msra.mxu0 0.0
        %683 = vmatprep.mubr.f32.mxu0 0.0
        %684 = vmatmul.mubr.f32.gmra.mrb[0].mxu0 %v582
        %v685 = vpop.f32.mrb[0].mxu0
        %v686 = vadd.f32 0.0, %v685
        %v687 = vpop.f32.mrb[0].mxu0
        %v688 = vadd.f32 0.0, %v687
        %689 = vmatprep.mubr.f32.mxu0 0.0
        %690 = vmatmul.mubr.f32.gmra.mrb[0].mxu0 %v583
        %v691 = vpop.f32.mrb[0].mxu0
        %v692 = vadd.f32 0.0, %v691
        %v693 = vpop.f32.mrb[0].mxu0
        %v694 = vadd.f32 0.0, %v693
        %695 = vmatprep.mubr.f32.mxu0 0.0
        %696 = vmatmul.mubr.f32.gmra.mrb[0].mxu0 %v584
        %v697 = vpop.f32.mrb[0].mxu0
        %v698 = vadd.f32 0.0, %v697
        %v699 = vpop.f32.mrb[0].mxu0
        %v700 = vadd.f32 0.0, %v699
        %701 = vmatprep.mubr.f32.mxu0 0.0
        %702 = vmatmul.mubr.f32.gmra.mrb[0].mxu0 %v585
        %v703 = vpop.f32.mrb[0].mxu0
        %v704 = vadd.f32 0.0, %v703
        %v705 = vpop.f32.mrb[0].mxu0
        %v706 = vadd.f32 0.0, %v705
        %707 = vdwg.mxu0
        %708 = vmatprep.subr.mxu0 %v551
        %709 = vmatpush1.msra.mxu0 %v550
        %710 = vmatprep.subr.mxu0 %v553
        %711 = vmatpush1.msra.mxu0 %v552
        %712 = vmatprep.subr.mxu0 %v555
        %713 = vmatpush1.msra.mxu0 %v554
        %714 = vmatprep.subr.mxu0 %v557
        %715 = vmatpush1.msra.mxu0 %v556
        %716 = vmatprep.subr.mxu0 %v559
        %717 = vmatpush1.msra.mxu0 %v558
        %718 = vmatprep.subr.mxu0 %v561
        %719 = vmatpush1.msra.mxu0 %v560
        %720 = vmatprep.subr.mxu0 %v563
        %721 = vmatpush1.msra.mxu0 %v562
        %722 = vmatprep.subr.mxu0 %v565
        %723 = vmatpush1.msra.mxu0 %v564
        %724 = vmatprep.subr.mxu0 %v567
        %725 = vmatpush1.msra.mxu0 %v566
        %726 = vmatprep.subr.mxu0 %v569
        %727 = vmatpush1.msra.mxu0 %v568
        %728 = vmatprep.subr.mxu0 %v571
        %729 = vmatpush1.msra.mxu0 %v570
        %730 = vmatprep.subr.mxu0 %v573
        %731 = vmatpush1.msra.mxu0 %v572
        %732 = vmatprep.subr.mxu0 %v575
        %733 = vmatpush1.msra.mxu0 %v574
        %734 = vmatprep.subr.mxu0 %v577
        %735 = vmatpush1.msra.mxu0 %v576
        %736 = vmatprep.subr.mxu0 %v579
        %737 = vmatpush1.msra.mxu0 %v578
        %738 = vmatprep.subr.mxu0 %v581
        %739 = vmatpush1.msra.mxu0 %v580
        %740 = vmatprep.subr.mxu0 0.0
        %741 = vmatpush1.msra.mxu0 0.0
        %742 = vmatprep.subr.mxu0 0.0
        %743 = vmatpush1.msra.mxu0 0.0
        %744 = vmatprep.subr.mxu0 0.0
        %745 = vmatpush1.msra.mxu0 0.0
        %746 = vmatprep.subr.mxu0 0.0
        %747 = vmatpush1.msra.mxu0 0.0
        %748 = vmatprep.subr.mxu0 0.0
        %749 = vmatpush1.msra.mxu0 0.0
        %750 = vmatprep.subr.mxu0 0.0
        %751 = vmatpush1.msra.mxu0 0.0
        %752 = vmatprep.subr.mxu0 0.0
        %753 = vmatpush1.msra.mxu0 0.0
        %754 = vmatprep.subr.mxu0 0.0
        %755 = vmatpush1.msra.mxu0 0.0
        %756 = vmatprep.subr.mxu0 0.0
        %757 = vmatpush1.msra.mxu0 0.0
        %758 = vmatprep.subr.mxu0 0.0
        %759 = vmatpush1.msra.mxu0 0.0
        %760 = vmatprep.subr.mxu0 0.0
        %761 = vmatpush1.msra.mxu0 0.0
        %762 = vmatprep.subr.mxu0 0.0
        %763 = vmatpush1.msra.mxu0 0.0
        %764 = vmatprep.subr.mxu0 0.0
        %765 = vmatpush1.msra.mxu0 0.0
        %766 = vmatprep.subr.mxu0 0.0
        %767 = vmatpush1.msra.mxu0 0.0
        %768 = vmatprep.subr.mxu0 0.0
        %769 = vmatpush1.msra.mxu0 0.0
        %770 = vmatprep.subr.mxu0 0.0
        %771 = vmatpush1.msra.mxu0 0.0
        %772 = vmatprep.mubr.f32.mxu0 0.0
        %773 = vmatmul.mubr.f32.gmra.mrb[0].mxu0 %v546
        %v774 = vpop.f32.mrb[0].mxu0
        %v775 = vadd.f32 %v686, %v774
        %v776 = vpop.f32.mrb[0].mxu0
        %v777 = vadd.f32 %v688, %v776
        %778 = vmatprep.mubr.f32.mxu0 0.0
        %779 = vmatmul.mubr.f32.gmra.mrb[0].mxu0 %v547
        %v780 = vpop.f32.mrb[0].mxu0
        %v781 = vadd.f32 %v692, %v780
        %v782 = vpop.f32.mrb[0].mxu0
        %v783 = vadd.f32 %v694, %v782
        %784 = vmatprep.mubr.f32.mxu0 0.0
        %785 = vmatmul.mubr.f32.gmra.mrb[0].mxu0 %v548
        %v786 = vpop.f32.mrb[0].mxu0
        %v787 = vadd.f32 %v698, %v786
        %v788 = vpop.f32.mrb[0].mxu0
        %v789 = vadd.f32 %v700, %v788
        %790 = vmatprep.mubr.f32.mxu0 0.0
        %791 = vmatmul.mubr.f32.gmra.mrb[0].mxu0 %v549
        %v792 = vpop.f32.mrb[0].mxu0
        %v793 = vadd.f32 %v704, %v792
        %v794 = vpop.f32.mrb[0].mxu0
        %v795 = vadd.f32 %v706, %v794
        %796 = vdwg.mxu0
        %v797 = vld [vmem:[#allocation2 + $0x2] sm:$0xff]
        %v798 = vld [vmem:[#allocation2 + $0xa] sm:$0xff]
        %v799 = vld [vmem:[#allocation2 + $0x12] sm:$0xff]
        %v800 = vld [vmem:[#allocation2 + $0x1a] sm:$0xff]
        %s801 = scalar_lea.vmem [#allocation7], 512
        %v802 = vld [vmem:[%s801] sm:$0xff]
        %v803 = vld [vmem:[%s801 + $0x8] sm:$0xff]
        %v804 = vld [vmem:[%s801 + $0x10] sm:$0xff]
        %v805 = vld [vmem:[%s801 + $0x18] sm:$0xff]
        %v806 = vld [vmem:[%s801 + $0x20] sm:$0xff]
        %v807 = vld [vmem:[%s801 + $0x28] sm:$0xff]
        %v808 = vld [vmem:[%s801 + $0x30] sm:$0xff]
        %v809 = vld [vmem:[%s801 + $0x38] sm:$0xff]
        %v810 = vld [vmem:[%s801 + $0x40] sm:$0xff]
        %v811 = vld [vmem:[%s801 + $0x48] sm:$0xff]
        %v812 = vld [vmem:[%s801 + $0x50] sm:$0xff]
        %v813 = vld [vmem:[%s801 + $0x58] sm:$0xff]
        %v814 = vld [vmem:[%s801 + $0x60] sm:$0xff]
        %v815 = vld [vmem:[%s801 + $0x68] sm:$0xff]
        %v816 = vld [vmem:[%s801 + $0x70] sm:$0xff]
        %v817 = vld [vmem:[%s801 + $0x78] sm:$0xff]
        %v818 = vld [vmem:[%s801 + $0x80] sm:$0xff]
        %v819 = vld [vmem:[%s801 + $0x88] sm:$0xff]
        %v820 = vld [vmem:[%s801 + $0x90] sm:$0xff]
        %v821 = vld [vmem:[%s801 + $0x98] sm:$0xff]
        %v822 = vld [vmem:[%s801 + $0xa0] sm:$0xff]
        %v823 = vld [vmem:[%s801 + $0xa8] sm:$0xff]
        %v824 = vld [vmem:[%s801 + $0xb0] sm:$0xff]
        %v825 = vld [vmem:[%s801 + $0xb8] sm:$0xff]
        %v826 = vld [vmem:[%s801 + $0xc0] sm:$0xff]
        %v827 = vld [vmem:[%s801 + $0xc8] sm:$0xff]
        %v828 = vld [vmem:[%s801 + $0xd0] sm:$0xff]
        %v829 = vld [vmem:[%s801 + $0xd8] sm:$0xff]
        %v830 = vld [vmem:[%s801 + $0xe0] sm:$0xff]
        %v831 = vld [vmem:[%s801 + $0xe8] sm:$0xff]
        %v832 = vld [vmem:[%s801 + $0xf0] sm:$0xff]
        %v833 = vld [vmem:[%s801 + $0xf8] sm:$0xff]
        %834 = vmatprep.subr.mxu0 %v803
        %835 = vmatpush1.msra.mxu0 %v802
        %836 = vmatprep.subr.mxu0 %v805
        %837 = vmatpush1.msra.mxu0 %v804
        %838 = vmatprep.subr.mxu0 %v807
        %839 = vmatpush1.msra.mxu0 %v806
        %840 = vmatprep.subr.mxu0 %v809
        %841 = vmatpush1.msra.mxu0 %v808
        %842 = vmatprep.subr.mxu0 %v811
        %843 = vmatpush1.msra.mxu0 %v810
        %844 = vmatprep.subr.mxu0 %v813
        %845 = vmatpush1.msra.mxu0 %v812
        %846 = vmatprep.subr.mxu0 %v815
        %847 = vmatpush1.msra.mxu0 %v814
        %848 = vmatprep.subr.mxu0 %v817
        %849 = vmatpush1.msra.mxu0 %v816
        %850 = vmatprep.subr.mxu0 %v819
        %851 = vmatpush1.msra.mxu0 %v818
        %852 = vmatprep.subr.mxu0 %v821
        %853 = vmatpush1.msra.mxu0 %v820
        %854 = vmatprep.subr.mxu0 %v823
        %855 = vmatpush1.msra.mxu0 %v822
        %856 = vmatprep.subr.mxu0 %v825
        %857 = vmatpush1.msra.mxu0 %v824
        %858 = vmatprep.subr.mxu0 %v827
        %859 = vmatpush1.msra.mxu0 %v826
        %860 = vmatprep.subr.mxu0 %v829
        %861 = vmatpush1.msra.mxu0 %v828
        %862 = vmatprep.subr.mxu0 %v831
        %863 = vmatpush1.msra.mxu0 %v830
        %864 = vmatprep.subr.mxu0 %v833
        %865 = vmatpush1.msra.mxu0 %v832
        %866 = vmatprep.subr.mxu0 0.0
        %867 = vmatpush1.msra.mxu0 0.0
        %868 = vmatprep.subr.mxu0 0.0
        %869 = vmatpush1.msra.mxu0 0.0
        %870 = vmatprep.subr.mxu0 0.0
        %871 = vmatpush1.msra.mxu0 0.0
        %872 = vmatprep.subr.mxu0 0.0
        %873 = vmatpush1.msra.mxu0 0.0
        %874 = vmatprep.subr.mxu0 0.0
        %875 = vmatpush1.msra.mxu0 0.0
        %876 = vmatprep.subr.mxu0 0.0
        %877 = vmatpush1.msra.mxu0 0.0
        %878 = vmatprep.subr.mxu0 0.0
        %879 = vmatpush1.msra.mxu0 0.0
        %880 = vmatprep.subr.mxu0 0.0
        %881 = vmatpush1.msra.mxu0 0.0
        %882 = vmatprep.subr.mxu0 0.0
        %883 = vmatpush1.msra.mxu0 0.0
        %884 = vmatprep.subr.mxu0 0.0
        %885 = vmatpush1.msra.mxu0 0.0
        %886 = vmatprep.subr.mxu0 0.0
        %887 = vmatpush1.msra.mxu0 0.0
        %888 = vmatprep.subr.mxu0 0.0
        %889 = vmatpush1.msra.mxu0 0.0
        %890 = vmatprep.subr.mxu0 0.0
        %891 = vmatpush1.msra.mxu0 0.0
        %892 = vmatprep.subr.mxu0 0.0
        %893 = vmatpush1.msra.mxu0 0.0
        %894 = vmatprep.subr.mxu0 0.0
        %895 = vmatpush1.msra.mxu0 0.0
        %896 = vmatprep.subr.mxu0 0.0
        %897 = vmatpush1.msra.mxu0 0.0
        %898 = vmatprep.mubr.f32.mxu0 0.0
        %899 = vmatmul.mubr.f32.gmra.mrb[0].mxu0 %v797
        %v900 = vpop.f32.mrb[0].mxu0
        %v901 = vadd.f32 0.0, %v900
        %v902 = vpop.f32.mrb[0].mxu0
        %v903 = vadd.f32 0.0, %v902
        %904 = vmatprep.mubr.f32.mxu0 0.0
        %905 = vmatmul.mubr.f32.gmra.mrb[0].mxu0 %v798
        %v906 = vpop.f32.mrb[0].mxu0
        %v907 = vadd.f32 0.0, %v906
        %v908 = vpop.f32.mrb[0].mxu0
        %v909 = vadd.f32 0.0, %v908
        %910 = vmatprep.mubr.f32.mxu0 0.0
        %911 = vmatmul.mubr.f32.gmra.mrb[0].mxu0 %v799
        %v912 = vpop.f32.mrb[0].mxu0
        %v913 = vadd.f32 0.0, %v912
        %v914 = vpop.f32.mrb[0].mxu0
        %v915 = vadd.f32 0.0, %v914
        %916 = vmatprep.mubr.f32.mxu0 0.0
        %917 = vmatmul.mubr.f32.gmra.mrb[0].mxu0 %v800
        %v918 = vpop.f32.mrb[0].mxu0
        %v919 = vadd.f32 0.0, %v918
        %v920 = vpop.f32.mrb[0].mxu0
        %v921 = vadd.f32 0.0, %v920
        %922 = vdwg.mxu0
        %v923 = vadd.f32 %v775, %v901
        %v924 = vadd.f32 %v777, %v903
        %v925 = vadd.f32 %v781, %v907
        %v926 = vadd.f32 %v783, %v909
        %v927 = vadd.f32 %v787, %v913
        %v928 = vadd.f32 %v789, %v915
        %v929 = vadd.f32 %v793, %v919
        %v930 = vadd.f32 %v795, %v921
        %v931 = vld [vmem:[%s4] sm:$0x3]
        %v933 = vlaneseq
        %v934 = vshrl.u32 %v933, 7
        %v935 = vsub.s32 0, %v934
        %v936 = vrot.slane %v931, %v935
        %v937 = vlaneseq
        %v938 = vshrl.u32 %v937, 7
        %v939 = vsub.s32 1, %v938
        %v940 = vrot.slane %v931, %v939
        %v943 = vadd.f32 %v923, %v936
        %v944 = vadd.f32 %v924, %v940
        %v945 = vadd.f32 %v925, %v936
        %v946 = vadd.f32 %v926, %v940
        %v947 = vadd.f32 %v927, %v936
        %v948 = vadd.f32 %v928, %v940
        %v949 = vadd.f32 %v929, %v936
        %v950 = vadd.f32 %v930, %v940
        %v951 = vmax.f32 %v943, 0.0
        %v952 = vmax.f32 %v944, 0.0
        %v953 = vmax.f32 %v945, 0.0
        %v954 = vmax.f32 %v946, 0.0
        %v955 = vmax.f32 %v947, 0.0
        %v956 = vmax.f32 %v948, 0.0
        %v957 = vmax.f32 %v949, 0.0
        %v958 = vmax.f32 %v950, 0.0
        %vm967 = vcmask 1040384
        %v968 = vrot.slane %v951, 7
        %v969 = vrot.slane %v952, 7
        %v970 = vrot.slane %v953, 7
        %v971 = vsel %vm967, %v968, %v970
        %v972 = vrot.slane %v954, 7
        %v973 = vsel %vm967, %v969, %v972
        %v974 = vrot.slane %v955, 7
        %v975 = vsel %vm967, %v970, %v974
        %v976 = vrot.slane %v956, 7
        %v977 = vsel %vm967, %v972, %v976
        %v978 = vrot.slane %v957, 7
        %v979 = vsel %vm967, %v974, %v978
        %v980 = vrot.slane %v958, 7
        %v981 = vsel %vm967, %v976, %v980
        %992 = vst [vmem:[#allocation3] sm:$0xfe] %v968
        %993 = vst [vmem:[#allocation3 + $0x8] sm:$0xfe] %v969
        %994 = vst [vmem:[#allocation3 + $0x10] sm:$0xff] %v971
        %995 = vst [vmem:[#allocation3 + $0x18] sm:$0xff] %v973
        %996 = vst [vmem:[#allocation3 + $0x20] sm:$0xff] %v975
        %997 = vst [vmem:[#allocation3 + $0x28] sm:$0xff] %v977
        %998 = vst [vmem:[#allocation3 + $0x30] sm:$0xff] %v979
        %999 = vst [vmem:[#allocation3 + $0x38] sm:$0xff] %v981
        %1000 = vst [vmem:[#allocation3 + $0x40] sm:$0x1] %v978
        %1001 = vst [vmem:[#allocation3 + $0x48] sm:$0x1] %v980
        %v1002 = vld [vmem:[#allocation3] sm:$0xff]
        %v1003 = vld [vmem:[#allocation3 + $0x8] sm:$0xff]
        %v1004 = vld [vmem:[#allocation3 + $0x10] sm:$0xff]
        %v1005 = vld [vmem:[#allocation3 + $0x18] sm:$0xff]
        %v1006 = vld [vmem:[#allocation3 + $0x20] sm:$0xff]
        %v1007 = vld [vmem:[#allocation3 + $0x28] sm:$0xff]
        %v1008 = vld [vmem:[#allocation3 + $0x30] sm:$0xff]
        %v1009 = vld [vmem:[#allocation3 + $0x38] sm:$0xff]
        %v1010 = vld [vmem:[#allocation9] sm:$0xff]
        %v1011 = vld [vmem:[#allocation9 + $0x8] sm:$0xff]
        %v1012 = vld [vmem:[#allocation9 + $0x10] sm:$0xff]
        %v1013 = vld [vmem:[#allocation9 + $0x18] sm:$0xff]
        %v1014 = vld [vmem:[#allocation9 + $0x20] sm:$0xff]
        %v1015 = vld [vmem:[#allocation9 + $0x28] sm:$0xff]
        %v1016 = vld [vmem:[#allocation9 + $0x30] sm:$0xff]
        %v1017 = vld [vmem:[#allocation9 + $0x38] sm:$0xff]
        %v1018 = vld [vmem:[#allocation9 + $0x40] sm:$0xff]
        %v1019 = vld [vmem:[#allocation9 + $0x48] sm:$0xff]
        %v1020 = vld [vmem:[#allocation9 + $0x50] sm:$0xff]
        %v1021 = vld [vmem:[#allocation9 + $0x58] sm:$0xff]
        %v1022 = vld [vmem:[#allocation9 + $0x60] sm:$0xff]
        %v1023 = vld [vmem:[#allocation9 + $0x68] sm:$0xff]
        %v1024 = vld [vmem:[#allocation9 + $0x70] sm:$0xff]
        %v1025 = vld [vmem:[#allocation9 + $0x78] sm:$0xff]
        %v1026 = vld [vmem:[#allocation9 + $0x80] sm:$0xff]
        %v1027 = vld [vmem:[#allocation9 + $0x88] sm:$0xff]
        %v1028 = vld [vmem:[#allocation9 + $0x90] sm:$0xff]
        %v1029 = vld [vmem:[#allocation9 + $0x98] sm:$0xff]
        %v1030 = vld [vmem:[#allocation9 + $0xa0] sm:$0xff]
        %v1031 = vld [vmem:[#allocation9 + $0xa8] sm:$0xff]
        %v1032 = vld [vmem:[#allocation9 + $0xb0] sm:$0xff]
        %v1033 = vld [vmem:[#allocation9 + $0xb8] sm:$0xff]
        %v1034 = vld [vmem:[#allocation9 + $0xc0] sm:$0xff]
        %v1035 = vld [vmem:[#allocation9 + $0xc8] sm:$0xff]
        %v1036 = vld [vmem:[#allocation9 + $0xd0] sm:$0xff]
        %v1037 = vld [vmem:[#allocation9 + $0xd8] sm:$0xff]
        %v1038 = vld [vmem:[#allocation9 + $0xe0] sm:$0xff]
        %v1039 = vld [vmem:[#allocation9 + $0xe8] sm:$0xff]
        %v1040 = vld [vmem:[#allocation9 + $0xf0] sm:$0xff]
        %v1041 = vld [vmem:[#allocation9 + $0xf8] sm:$0xff]
        %v1042 = vld [vmem:[#allocation3] sm:$0xfe]
        %v1043 = vld [vmem:[#allocation3 + $0x8] sm:$0xfe]
        %v1044 = vld [vmem:[#allocation3 + $0x40] sm:$0x1]
        %v1045 = vld [vmem:[#allocation3 + $0x48] sm:$0x1]
        %s1046 = scalar_lea.vmem [#allocation9], 256
        %v1047 = vld [vmem:[%s1046] sm:$0xff]
        %v1048 = vld [vmem:[%s1046 + $0x8] sm:$0xff]
        %v1049 = vld [vmem:[%s1046 + $0x10] sm:$0xff]
        %v1050 = vld [vmem:[%s1046 + $0x18] sm:$0xff]
        %v1051 = vld [vmem:[%s1046 + $0x20] sm:$0xff]
        %v1052 = vld [vmem:[%s1046 + $0x28] sm:$0xff]
        %v1053 = vld [vmem:[%s1046 + $0x30] sm:$0xff]
        %v1054 = vld [vmem:[%s1046 + $0x38] sm:$0xff]
        %v1055 = vld [vmem:[%s1046 + $0x40] sm:$0xff]
        %v1056 = vld [vmem:[%s1046 + $0x48] sm:$0xff]
        %v1057 = vld [vmem:[%s1046 + $0x50] sm:$0xff]
        %v1058 = vld [vmem:[%s1046 + $0x58] sm:$0xff]
        %v1059 = vld [vmem:[%s1046 + $0x60] sm:$0xff]
        %v1060 = vld [vmem:[%s1046 + $0x68] sm:$0xff]
        %v1061 = vld [vmem:[%s1046 + $0x70] sm:$0xff]
        %v1062 = vld [vmem:[%s1046 + $0x78] sm:$0xff]
        %v1063 = vld [vmem:[%s1046 + $0x80] sm:$0xff]
        %v1064 = vld [vmem:[%s1046 + $0x88] sm:$0xff]
        %v1065 = vld [vmem:[%s1046 + $0x90] sm:$0xff]
        %v1066 = vld [vmem:[%s1046 + $0x98] sm:$0xff]
        %v1067 = vld [vmem:[%s1046 + $0xa0] sm:$0xff]
        %v1068 = vld [vmem:[%s1046 + $0xa8] sm:$0xff]
        %v1069 = vld [vmem:[%s1046 + $0xb0] sm:$0xff]
        %v1070 = vld [vmem:[%s1046 + $0xb8] sm:$0xff]
        %v1071 = vld [vmem:[%s1046 + $0xc0] sm:$0xff]
        %v1072 = vld [vmem:[%s1046 + $0xc8] sm:$0xff]
        %v1073 = vld [vmem:[%s1046 + $0xd0] sm:$0xff]
        %v1074 = vld [vmem:[%s1046 + $0xd8] sm:$0xff]
        %v1075 = vld [vmem:[%s1046 + $0xe0] sm:$0xff]
        %v1076 = vld [vmem:[%s1046 + $0xe8] sm:$0xff]
        %v1077 = vld [vmem:[%s1046 + $0xf0] sm:$0xff]
        %v1078 = vld [vmem:[%s1046 + $0xf8] sm:$0xff]
        %vm1089 = vcmask 1046528
        %v1090 = vrot.slane %v1042, 1
        %v1091 = vrot.slane %v1004, 1
        %v1092 = vsel %vm1089, %v1090, %v1091
        %v1093 = vrot.slane %v1043, 1
        %v1094 = vrot.slane %v1005, 1
        %v1095 = vsel %vm1089, %v1093, %v1094
        %v1096 = vrot.slane %v1006, 1
        %v1097 = vsel %vm1089, %v1091, %v1096
        %v1098 = vrot.slane %v1007, 1
        %v1099 = vsel %vm1089, %v1094, %v1098
        %v1100 = vrot.slane %v1008, 1
        %v1101 = vsel %vm1089, %v1096, %v1100
        %v1102 = vrot.slane %v1009, 1
        %v1103 = vsel %vm1089, %v1098, %v1102
        %v1104 = vrot.slane %v1044, 1
        %v1105 = vsel %vm1089, %v1100, %v1104
        %v1106 = vrot.slane %v1045, 1
        %v1107 = vsel %vm1089, %v1102, %v1106
        %1116 = vmatprep.subr.mxu0 0.0
        %1117 = vmatpush1.msra.mxu0 %v1047
        %1118 = vmatprep.subr.mxu0 0.0
        %1119 = vmatpush1.msra.mxu0 %v1048
        %1120 = vmatprep.subr.mxu0 0.0
        %1121 = vmatpush1.msra.mxu0 %v1049
        %1122 = vmatprep.subr.mxu0 0.0
        %1123 = vmatpush1.msra.mxu0 %v1050
        %1124 = vmatprep.subr.mxu0 0.0
        %1125 = vmatpush1.msra.mxu0 %v1051
        %1126 = vmatprep.subr.mxu0 0.0
        %1127 = vmatpush1.msra.mxu0 %v1052
        %1128 = vmatprep.subr.mxu0 0.0
        %1129 = vmatpush1.msra.mxu0 %v1053
        %1130 = vmatprep.subr.mxu0 0.0
        %1131 = vmatpush1.msra.mxu0 %v1054
        %1132 = vmatprep.subr.mxu0 0.0
        %1133 = vmatpush1.msra.mxu0 %v1055
        %1134 = vmatprep.subr.mxu0 0.0
        %1135 = vmatpush1.msra.mxu0 %v1056
        %1136 = vmatprep.subr.mxu0 0.0
        %1137 = vmatpush1.msra.mxu0 %v1057
        %1138 = vmatprep.subr.mxu0 0.0
        %1139 = vmatpush1.msra.mxu0 %v1058
        %1140 = vmatprep.subr.mxu0 0.0
        %1141 = vmatpush1.msra.mxu0 %v1059
        %1142 = vmatprep.subr.mxu0 0.0
        %1143 = vmatpush1.msra.mxu0 %v1060
        %1144 = vmatprep.subr.mxu0 0.0
        %1145 = vmatpush1.msra.mxu0 %v1061
        %1146 = vmatprep.subr.mxu0 0.0
        %1147 = vmatpush1.msra.mxu0 %v1062
        %1148 = vmatprep.subr.mxu0 0.0
        %1149 = vmatpush1.msra.mxu0 %v1063
        %1150 = vmatprep.subr.mxu0 0.0
        %1151 = vmatpush1.msra.mxu0 %v1064
        %1152 = vmatprep.subr.mxu0 0.0
        %1153 = vmatpush1.msra.mxu0 %v1065
        %1154 = vmatprep.subr.mxu0 0.0
        %1155 = vmatpush1.msra.mxu0 %v1066
        %1156 = vmatprep.subr.mxu0 0.0
        %1157 = vmatpush1.msra.mxu0 %v1067
        %1158 = vmatprep.subr.mxu0 0.0
        %1159 = vmatpush1.msra.mxu0 %v1068
        %1160 = vmatprep.subr.mxu0 0.0
        %1161 = vmatpush1.msra.mxu0 %v1069
        %1162 = vmatprep.subr.mxu0 0.0
        %1163 = vmatpush1.msra.mxu0 %v1070
        %1164 = vmatprep.subr.mxu0 0.0
        %1165 = vmatpush1.msra.mxu0 %v1071
        %1166 = vmatprep.subr.mxu0 0.0
        %1167 = vmatpush1.msra.mxu0 %v1072
        %1168 = vmatprep.subr.mxu0 0.0
        %1169 = vmatpush1.msra.mxu0 %v1073
        %1170 = vmatprep.subr.mxu0 0.0
        %1171 = vmatpush1.msra.mxu0 %v1074
        %1172 = vmatprep.subr.mxu0 0.0
        %1173 = vmatpush1.msra.mxu0 %v1075
        %1174 = vmatprep.subr.mxu0 0.0
        %1175 = vmatpush1.msra.mxu0 %v1076
        %1176 = vmatprep.subr.mxu0 0.0
        %1177 = vmatpush1.msra.mxu0 %v1077
        %1178 = vmatprep.subr.mxu0 0.0
        %1179 = vmatpush1.msra.mxu0 %v1078
        %1180 = vmatprep.mubr.f32.mxu0 %v1095
        %1181 = vmatmul.mubr.f32.gmra.mrb[0].mxu0 %v1092
        %v1182 = vpop.f32.mrb[0].mxu0
        %v1183 = vadd.f32 0.0, %v1182
        %v1184 = vpop.f32.mrb[0].mxu0
        %1185 = vmatprep.mubr.f32.mxu0 %v1099
        %1186 = vmatmul.mubr.f32.gmra.mrb[0].mxu0 %v1097
        %v1187 = vpop.f32.mrb[0].mxu0
        %v1188 = vadd.f32 0.0, %v1187
        %v1189 = vpop.f32.mrb[0].mxu0
        %1190 = vmatprep.mubr.f32.mxu0 %v1103
        %1191 = vmatmul.mubr.f32.gmra.mrb[0].mxu0 %v1101
        %v1192 = vpop.f32.mrb[0].mxu0
        %v1193 = vadd.f32 0.0, %v1192
        %v1194 = vpop.f32.mrb[0].mxu0
        %1195 = vmatprep.mubr.f32.mxu0 %v1107
        %1196 = vmatmul.mubr.f32.gmra.mrb[0].mxu0 %v1105
        %v1197 = vpop.f32.mrb[0].mxu0
        %v1198 = vadd.f32 0.0, %v1197
        %v1199 = vpop.f32.mrb[0].mxu0
        %1200 = vdwg.mxu0
        %1201 = vmatprep.subr.mxu0 0.0
        %1202 = vmatpush1.msra.mxu0 %v1010
        %1203 = vmatprep.subr.mxu0 0.0
        %1204 = vmatpush1.msra.mxu0 %v1011
        %1205 = vmatprep.subr.mxu0 0.0
        %1206 = vmatpush1.msra.mxu0 %v1012
        %1207 = vmatprep.subr.mxu0 0.0
        %1208 = vmatpush1.msra.mxu0 %v1013
        %1209 = vmatprep.subr.mxu0 0.0
        %1210 = vmatpush1.msra.mxu0 %v1014
        %1211 = vmatprep.subr.mxu0 0.0
        %1212 = vmatpush1.msra.mxu0 %v1015
        %1213 = vmatprep.subr.mxu0 0.0
        %1214 = vmatpush1.msra.mxu0 %v1016
        %1215 = vmatprep.subr.mxu0 0.0
        %1216 = vmatpush1.msra.mxu0 %v1017
        %1217 = vmatprep.subr.mxu0 0.0
        %1218 = vmatpush1.msra.mxu0 %v1018
        %1219 = vmatprep.subr.mxu0 0.0
        %1220 = vmatpush1.msra.mxu0 %v1019
        %1221 = vmatprep.subr.mxu0 0.0
        %1222 = vmatpush1.msra.mxu0 %v1020
        %1223 = vmatprep.subr.mxu0 0.0
        %1224 = vmatpush1.msra.mxu0 %v1021
        %1225 = vmatprep.subr.mxu0 0.0
        %1226 = vmatpush1.msra.mxu0 %v1022
        %1227 = vmatprep.subr.mxu0 0.0
        %1228 = vmatpush1.msra.mxu0 %v1023
        %1229 = vmatprep.subr.mxu0 0.0
        %1230 = vmatpush1.msra.mxu0 %v1024
        %1231 = vmatprep.subr.mxu0 0.0
        %1232 = vmatpush1.msra.mxu0 %v1025
        %1233 = vmatprep.subr.mxu0 0.0
        %1234 = vmatpush1.msra.mxu0 %v1026
        %1235 = vmatprep.subr.mxu0 0.0
        %1236 = vmatpush1.msra.mxu0 %v1027
        %1237 = vmatprep.subr.mxu0 0.0
        %1238 = vmatpush1.msra.mxu0 %v1028
        %1239 = vmatprep.subr.mxu0 0.0
        %1240 = vmatpush1.msra.mxu0 %v1029
        %1241 = vmatprep.subr.mxu0 0.0
        %1242 = vmatpush1.msra.mxu0 %v1030
        %1243 = vmatprep.subr.mxu0 0.0
        %1244 = vmatpush1.msra.mxu0 %v1031
        %1245 = vmatprep.subr.mxu0 0.0
        %1246 = vmatpush1.msra.mxu0 %v1032
        %1247 = vmatprep.subr.mxu0 0.0
        %1248 = vmatpush1.msra.mxu0 %v1033
        %1249 = vmatprep.subr.mxu0 0.0
        %1250 = vmatpush1.msra.mxu0 %v1034
        %1251 = vmatprep.subr.mxu0 0.0
        %1252 = vmatpush1.msra.mxu0 %v1035
        %1253 = vmatprep.subr.mxu0 0.0
        %1254 = vmatpush1.msra.mxu0 %v1036
        %1255 = vmatprep.subr.mxu0 0.0
        %1256 = vmatpush1.msra.mxu0 %v1037
        %1257 = vmatprep.subr.mxu0 0.0
        %1258 = vmatpush1.msra.mxu0 %v1038
        %1259 = vmatprep.subr.mxu0 0.0
        %1260 = vmatpush1.msra.mxu0 %v1039
        %1261 = vmatprep.subr.mxu0 0.0
        %1262 = vmatpush1.msra.mxu0 %v1040
        %1263 = vmatprep.subr.mxu0 0.0
        %1264 = vmatpush1.msra.mxu0 %v1041
        %1265 = vmatprep.mubr.f32.mxu0 %v1003
        %1266 = vmatmul.mubr.f32.gmra.mrb[0].mxu0 %v1002
        %v1267 = vpop.f32.mrb[0].mxu0
        %v1268 = vadd.f32 %v1183, %v1267
        %v1269 = vpop.f32.mrb[0].mxu0
        %1270 = vmatprep.mubr.f32.mxu0 %v1005
        %1271 = vmatmul.mubr.f32.gmra.mrb[0].mxu0 %v1004
        %v1272 = vpop.f32.mrb[0].mxu0
        %v1273 = vadd.f32 %v1188, %v1272
        %v1274 = vpop.f32.mrb[0].mxu0
        %1275 = vmatprep.mubr.f32.mxu0 %v1007
        %1276 = vmatmul.mubr.f32.gmra.mrb[0].mxu0 %v1006
        %v1277 = vpop.f32.mrb[0].mxu0
        %v1278 = vadd.f32 %v1193, %v1277
        %v1279 = vpop.f32.mrb[0].mxu0
        %1280 = vmatprep.mubr.f32.mxu0 %v1009
        %1281 = vmatmul.mubr.f32.gmra.mrb[0].mxu0 %v1008
        %v1282 = vpop.f32.mrb[0].mxu0
        %v1283 = vadd.f32 %v1198, %v1282
        %v1284 = vpop.f32.mrb[0].mxu0
        %1285 = vdwg.mxu0
        %v1286 = vld [vmem:[#allocation3] sm:$0xfc]
        %v1287 = vld [vmem:[#allocation3 + $0x8] sm:$0xfc]
        %v1288 = vld [vmem:[#allocation3 + $0x40] sm:$0x3]
        %v1289 = vld [vmem:[#allocation3 + $0x48] sm:$0x3]
        %s1290 = scalar_lea.vmem [#allocation9], 512
        %v1291 = vld [vmem:[%s1290] sm:$0xff]
        %v1292 = vld [vmem:[%s1290 + $0x8] sm:$0xff]
        %v1293 = vld [vmem:[%s1290 + $0x10] sm:$0xff]
        %v1294 = vld [vmem:[%s1290 + $0x18] sm:$0xff]
        %v1295 = vld [vmem:[%s1290 + $0x20] sm:$0xff]
        %v1296 = vld [vmem:[%s1290 + $0x28] sm:$0xff]
        %v1297 = vld [vmem:[%s1290 + $0x30] sm:$0xff]
        %v1298 = vld [vmem:[%s1290 + $0x38] sm:$0xff]
        %v1299 = vld [vmem:[%s1290 + $0x40] sm:$0xff]
        %v1300 = vld [vmem:[%s1290 + $0x48] sm:$0xff]
        %v1301 = vld [vmem:[%s1290 + $0x50] sm:$0xff]
        %v1302 = vld [vmem:[%s1290 + $0x58] sm:$0xff]
        %v1303 = vld [vmem:[%s1290 + $0x60] sm:$0xff]
        %v1304 = vld [vmem:[%s1290 + $0x68] sm:$0xff]
        %v1305 = vld [vmem:[%s1290 + $0x70] sm:$0xff]
        %v1306 = vld [vmem:[%s1290 + $0x78] sm:$0xff]
        %v1307 = vld [vmem:[%s1290 + $0x80] sm:$0xff]
        %v1308 = vld [vmem:[%s1290 + $0x88] sm:$0xff]
        %v1309 = vld [vmem:[%s1290 + $0x90] sm:$0xff]
        %v1310 = vld [vmem:[%s1290 + $0x98] sm:$0xff]
        %v1311 = vld [vmem:[%s1290 + $0xa0] sm:$0xff]
        %v1312 = vld [vmem:[%s1290 + $0xa8] sm:$0xff]
        %v1313 = vld [vmem:[%s1290 + $0xb0] sm:$0xff]
        %v1314 = vld [vmem:[%s1290 + $0xb8] sm:$0xff]
        %v1315 = vld [vmem:[%s1290 + $0xc0] sm:$0xff]
        %v1316 = vld [vmem:[%s1290 + $0xc8] sm:$0xff]
        %v1317 = vld [vmem:[%s1290 + $0xd0] sm:$0xff]
        %v1318 = vld [vmem:[%s1290 + $0xd8] sm:$0xff]
        %v1319 = vld [vmem:[%s1290 + $0xe0] sm:$0xff]
        %v1320 = vld [vmem:[%s1290 + $0xe8] sm:$0xff]
        %v1321 = vld [vmem:[%s1290 + $0xf0] sm:$0xff]
        %v1322 = vld [vmem:[%s1290 + $0xf8] sm:$0xff]
        %vm1327 = vcmask 1045504
        %v1328 = vrot.slane %v1286, 2
        %v1329 = vrot.slane %v1004, 2
        %v1330 = vsel %vm1327, %v1328, %v1329
        %v1331 = vrot.slane %v1287, 2
        %v1332 = vrot.slane %v1005, 2
        %v1333 = vsel %vm1327, %v1331, %v1332
        %v1334 = vrot.slane %v1006, 2
        %v1335 = vsel %vm1327, %v1329, %v1334
        %v1336 = vrot.slane %v1007, 2
        %v1337 = vsel %vm1327, %v1332, %v1336
        %v1338 = vrot.slane %v1008, 2
        %v1339 = vsel %vm1327, %v1334, %v1338
        %v1340 = vrot.slane %v1009, 2
        %v1341 = vsel %vm1327, %v1336, %v1340
        %v1342 = vrot.slane %v1288, 2
        %v1343 = vsel %vm1327, %v1338, %v1342
        %v1344 = vrot.slane %v1289, 2
        %v1345 = vsel %vm1327, %v1340, %v1344
        %1354 = vmatprep.subr.mxu0 0.0
        %1355 = vmatpush1.msra.mxu0 %v1291
        %1356 = vmatprep.subr.mxu0 0.0
        %1357 = vmatpush1.msra.mxu0 %v1292
        %1358 = vmatprep.subr.mxu0 0.0
        %1359 = vmatpush1.msra.mxu0 %v1293
        %1360 = vmatprep.subr.mxu0 0.0
        %1361 = vmatpush1.msra.mxu0 %v1294
        %1362 = vmatprep.subr.mxu0 0.0
        %1363 = vmatpush1.msra.mxu0 %v1295
        %1364 = vmatprep.subr.mxu0 0.0
        %1365 = vmatpush1.msra.mxu0 %v1296
        %1366 = vmatprep.subr.mxu0 0.0
        %1367 = vmatpush1.msra.mxu0 %v1297
        %1368 = vmatprep.subr.mxu0 0.0
        %1369 = vmatpush1.msra.mxu0 %v1298
        %1370 = vmatprep.subr.mxu0 0.0
        %1371 = vmatpush1.msra.mxu0 %v1299
        %1372 = vmatprep.subr.mxu0 0.0
        %1373 = vmatpush1.msra.mxu0 %v1300
        %1374 = vmatprep.subr.mxu0 0.0
        %1375 = vmatpush1.msra.mxu0 %v1301
        %1376 = vmatprep.subr.mxu0 0.0
        %1377 = vmatpush1.msra.mxu0 %v1302
        %1378 = vmatprep.subr.mxu0 0.0
        %1379 = vmatpush1.msra.mxu0 %v1303
        %1380 = vmatprep.subr.mxu0 0.0
        %1381 = vmatpush1.msra.mxu0 %v1304
        %1382 = vmatprep.subr.mxu0 0.0
        %1383 = vmatpush1.msra.mxu0 %v1305
        %1384 = vmatprep.subr.mxu0 0.0
        %1385 = vmatpush1.msra.mxu0 %v1306
        %1386 = vmatprep.subr.mxu0 0.0
        %1387 = vmatpush1.msra.mxu0 %v1307
        %1388 = vmatprep.subr.mxu0 0.0
        %1389 = vmatpush1.msra.mxu0 %v1308
        %1390 = vmatprep.subr.mxu0 0.0
        %1391 = vmatpush1.msra.mxu0 %v1309
        %1392 = vmatprep.subr.mxu0 0.0
        %1393 = vmatpush1.msra.mxu0 %v1310
        %1394 = vmatprep.subr.mxu0 0.0
        %1395 = vmatpush1.msra.mxu0 %v1311
        %1396 = vmatprep.subr.mxu0 0.0
        %1397 = vmatpush1.msra.mxu0 %v1312
        %1398 = vmatprep.subr.mxu0 0.0
        %1399 = vmatpush1.msra.mxu0 %v1313
        %1400 = vmatprep.subr.mxu0 0.0
        %1401 = vmatpush1.msra.mxu0 %v1314
        %1402 = vmatprep.subr.mxu0 0.0
        %1403 = vmatpush1.msra.mxu0 %v1315
        %1404 = vmatprep.subr.mxu0 0.0
        %1405 = vmatpush1.msra.mxu0 %v1316
        %1406 = vmatprep.subr.mxu0 0.0
        %1407 = vmatpush1.msra.mxu0 %v1317
        %1408 = vmatprep.subr.mxu0 0.0
        %1409 = vmatpush1.msra.mxu0 %v1318
        %1410 = vmatprep.subr.mxu0 0.0
        %1411 = vmatpush1.msra.mxu0 %v1319
        %1412 = vmatprep.subr.mxu0 0.0
        %1413 = vmatpush1.msra.mxu0 %v1320
        %1414 = vmatprep.subr.mxu0 0.0
        %1415 = vmatpush1.msra.mxu0 %v1321
        %1416 = vmatprep.subr.mxu0 0.0
        %1417 = vmatpush1.msra.mxu0 %v1322
        %1418 = vmatprep.mubr.f32.mxu0 %v1333
        %1419 = vmatmul.mubr.f32.gmra.mrb[0].mxu0 %v1330
        %v1420 = vpop.f32.mrb[0].mxu0
        %v1421 = vadd.f32 0.0, %v1420
        %v1422 = vpop.f32.mrb[0].mxu0
        %1423 = vmatprep.mubr.f32.mxu0 %v1337
        %1424 = vmatmul.mubr.f32.gmra.mrb[0].mxu0 %v1335
        %v1425 = vpop.f32.mrb[0].mxu0
        %v1426 = vadd.f32 0.0, %v1425
        %v1427 = vpop.f32.mrb[0].mxu0
        %1428 = vmatprep.mubr.f32.mxu0 %v1341
        %1429 = vmatmul.mubr.f32.gmra.mrb[0].mxu0 %v1339
        %v1430 = vpop.f32.mrb[0].mxu0
        %v1431 = vadd.f32 0.0, %v1430
        %v1432 = vpop.f32.mrb[0].mxu0
        %1433 = vmatprep.mubr.f32.mxu0 %v1345
        %1434 = vmatmul.mubr.f32.gmra.mrb[0].mxu0 %v1343
        %v1435 = vpop.f32.mrb[0].mxu0
        %v1436 = vadd.f32 0.0, %v1435
        %v1437 = vpop.f32.mrb[0].mxu0
        %1438 = vdwg.mxu0
        %v1439 = vadd.f32 %v1268, %v1421
        %v1440 = vadd.f32 %v1273, %v1426
        %v1441 = vadd.f32 %v1278, %v1431
        %v1442 = vadd.f32 %v1283, %v1436
        %v1443 = vld [vmem:[%s6] sm:$0x1]
        %v1445 = vlaneseq
        %v1446 = vshrl.u32 %v1445, 7
        %v1447 = vsub.s32 0, %v1446
        %v1448 = vrot.slane %v1443, %v1447
        %v1450 = vadd.f32 %v1439, %v1448
        %v1451 = vadd.f32 %v1440, %v1448
        %v1452 = vadd.f32 %v1441, %v1448
        %v1453 = vadd.f32 %v1442, %v1448
        %v1454 = vmax.f32 %v1450, 0.0
        %v1455 = vmax.f32 %v1451, 0.0
        %v1456 = vmax.f32 %v1452, 0.0
        %v1457 = vmax.f32 %v1453, 0.0
        %1458 = vst [vmem:[%s315] sm:$0xff] %v1454
        %1459 = vst [vmem:[%s315 + $0x8] sm:$0xff] %v1455
        %1460 = vst [vmem:[%s315 + $0x10] sm:$0xff] %v1456
        %1461 = vst [vmem:[%s315 + $0x18] sm:$0xff] %v1457
        %s1462 = sand.u32 %s183, 1
        %s1463 = scalar_lea.sflag [#allocation6], %s1462
        %s1464 = sand.u32 %s183, 1
        %s1465 = smul.addr %s1464, 32
        %s1466 = scalar_lea.vmem [#allocation10], %s1465
        // Predicated region
        $region61: #{tpu_custom_call.1} parent=47 // pred_check
          %p1467 = pneg %p193
        $region62: #{tpu_custom_call.1} parent=47 // pred_check_branch
          %1469 = sbr.rel (%p1467) target = $region64
        $region63: #{tpu_custom_call.1} parent=47 // pred_region
          %s1471 = ssub.s32 512, 512
          %1472 = vsyncadd %s1463, %s1471
          %s1473 = smul.addr %s23, 4
          %s1474 = smul.addr %s1473, 128
          %s1475 = scalar_lea.hbm %s7, %s1474
          %s1476 = sshll.u32 %s1466, 4
          %s1477 = int_to_ptr.vmem [resolvable:$true] %s1476
          %1482 = dma.vmem_to_hbm [thread:$0]  %s1477, 512, %s1475, %s1463, 128, 128, 8
        $region64: #{tpu_custom_call.1} parent=47 // pred_fallthru
          _
      $region48: #{tpu_custom_call.1} parent=5 // pred_fallthru
        _
      %p1483 = scmp.le.s32.totalorder 2, %s18
      // Predicated region
      $region65: #{tpu_custom_call.1} parent=5 // pred_check
        %p1484 = pneg %p1483
      $region66: #{tpu_custom_call.1} parent=5 // pred_check_branch
        %1486 = sbr.rel (%p1484) target = $region68
      $region67: #{tpu_custom_call.1} parent=5 // pred_region
        %s1487 = ssub.s32 %s18, 2
        // Predicated region
        $region69: #{tpu_custom_call.1} parent=67 // pred_check
          %p1488 = pneg %p199
        $region70: #{tpu_custom_call.1} parent=67 // pred_check_branch
          %1490 = sbr.rel (%p1488) target = $region72
        $region71: #{tpu_custom_call.1} parent=67 // pred_region
          %s1491 = sand.u32 %s184, 1
          %s1492 = scalar_lea.sflag [#allocation6], %s1491
          %s1493 = sand.u32 %s184, 1
          %s1494 = smul.addr %s1493, 32
          %s1495 = scalar_lea.vmem [#allocation10], %s1494
          %1496 = dma.done %s1492, 512
        $region72: #{tpu_custom_call.1} parent=67 // pred_fallthru
          _
      $region68: #{tpu_custom_call.1} parent=5 // pred_fallthru
        _
    $region6: #{tpu_custom_call.1} parent=1 // loop_footer
      %s22 = sadd.s32 1, %s18
    $region7: #{tpu_custom_call.1} parent=1 // loop_footer_branch
      %17 = sbr.rel target = $region3
    $region8: #{tpu_custom_call.1} parent=1 // loop_exit
      _
    %1497 = vsyncpa [#allocation5], 1
    %s1498 = scalar_lea.sflag [#allocation5], 1
    %1499 = vsyncpa %s1498, 1
    %1500 = vsyncpa [#allocation8], 1
    %1501 = vsyncpa [#allocation6], 1
    %s1502 = scalar_lea.sflag [#allocation6], 1
    %1503 = vsyncpa %s1502, 1

</llo_original>
